<compile_context>
chip_gen: v6e
topology: v6e:2x2x1
jax: 0.10.0
libtpu: 0.0.40
codegen_flags: <defaults>
</compile_context>

<pallas_src>
import jax
import jax.numpy as jnp
import numpy as np
from jax import lax
from jax.experimental import pallas as pl
from jax.experimental.pallas import tpu as pltpu


def _round_up(x, m):
    return ((x + m - 1) // m) * m


# --------------------------------------------------------------------------------------
# Kernel
# --------------------------------------------------------------------------------------
def lie_detector_kernel(len_ref, x_ref,
                        w_ih_ref, w_hh_ref, b_ih_ref, b_hh_ref,
                        w_c_ref, b_c_ref,
                        out_ref,
                        gi_scratch):
    """One batch-block: full GRU time loop + classifier.

    len_ref  : (Bb, 1)       int32
    x_ref    : (T, Bb, F)    float32
    w_ih_ref : (F, 3*Hp)     float32  (gate order [r, z, n], each gate padded to Hp lanes)
    w_hh_ref : (Hp, 3*Hp)    float32
    b_ih_ref : (1, 3*Hp)     float32
    b_hh_ref : (1, 3*Hp)     float32
    w_c_ref  : (Hp, Cp)      float32  (classifier, logits padded to Cp lanes)
    b_c_ref  : (1, Cp)       float32
    out_ref  : (Bb, Cp)      float32  (first 2 lanes are the real logits)
    gi_scratch : (T, Bb, 3*Hp) float32 VMEM scratch for the precomputed input projection
    """
    T, Bb, F = x_ref.shape
    Hp = w_hh_ref.shape[0]

    # ---- Hoisted input projection: one batched MXU matmul for all timesteps. ----
    x_all = x_ref[...].reshape(T * Bb, F)
    gi_all = jnp.dot(x_all, w_ih_ref[...],
                     preferred_element_type=jnp.float32) + b_ih_ref[...]      # (T*Bb, 3Hp)
    gi_scratch[...] = gi_all.reshape(T, Bb, 3 * Hp)

    # ---- Loop-invariant values hoisted out of the recurrence. ----
    w_hh = w_hh_ref[...]
    b_hh = jnp.broadcast_to(b_hh_ref[...], (Bb, 3 * Hp))
    lens_m1 = len_ref[...] - 1                                                # (Bb, 1) int32

    h0 = jnp.zeros((Bb, Hp), jnp.float32)      # hidden=None -> zero initial state
    last0 = jnp.zeros((Bb, Hp), jnp.float32)   # hidden state at each row's last valid step

    def step(t, carry):
        h_prev, last = carry
        gi = gi_scratch[t]                                                    # (Bb, 3Hp)
        gh = jnp.dot(h_prev, w_hh, preferred_element_type=jnp.float32) + b_hh

        # Lane-aligned 128-wide gate slabs (no sub-lane shuffles on the serial chain).
        r = jax.nn.sigmoid(gi[:, 0 * Hp:1 * Hp] + gh[:, 0 * Hp:1 * Hp])
        z = jax.nn.sigmoid(gi[:, 1 * Hp:2 * Hp] + gh[:, 1 * Hp:2 * Hp])
        n = jnp.tanh(gi[:, 2 * Hp:3 * Hp] + r * gh[:, 2 * Hp:3 * Hp])
        h_new = (1.0 - z) * n + z * h_prev

        last = jnp.where(lens_m1 == t, h_new, last)
        return h_new, last

    _, last = lax.fori_loop(0, T, step, (h0, last0), unroll=True)

    logits = jnp.dot(last, w_c_ref[...],
                     preferred_element_type=jnp.float32) + b_c_ref[...]       # (Bb, Cp)
    out_ref[...] = logits.astype(out_ref.dtype)


# --------------------------------------------------------------------------------------
# Parameter padding (host side): lane-align each GRU gate to Hp and the classifier to Cp.
# Padded weight rows/cols and biases are zero, so padded hidden lanes stay exactly zero.
# --------------------------------------------------------------------------------------
def _pad_gates_lastdim(w, H, Hp):
    """(..., 3H) -> (..., 3Hp): gate g lands at lanes [g*Hp, g*Hp + H), rest zero."""
    pads = [(0, 0)] * (w.ndim - 1) + [(0, Hp - H)]
    blocks = [jnp.pad(w[..., g * H:(g + 1) * H], pads) for g in range(3)]
    return jnp.concatenate(blocks, axis=-1)


def pad_params(params, H, Hp, Cp):
    f32 = jnp.float32
    w_ih = _pad_gates_lastdim(params["w_ih"].astype(f32), H, Hp)          # (F, 3Hp)
    w_hh = _pad_gates_lastdim(params["w_hh"].astype(f32), H, Hp)          # (H, 3Hp)
    w_hh = jnp.pad(w_hh, ((0, Hp - H), (0, 0)))                           # (Hp, 3Hp)
    b_ih = _pad_gates_lastdim(params["b_ih"].astype(f32), H, Hp)          # (1, 3Hp)
    b_hh = _pad_gates_lastdim(params["b_hh"].astype(f32), H, Hp)          # (1, 3Hp)
    w_c = jnp.pad(params["w_c"].astype(f32), ((0, Hp - H), (0, Cp - 2)))  # (Hp, Cp)
    b_c = jnp.pad(params["b_c"].astype(f32), ((0, 0), (0, Cp - 2)))       # (1, Cp)
    return dict(w_ih=w_ih, w_hh=w_hh, b_ih=b_ih, b_hh=b_hh, w_c=w_c, b_c=b_c)


# --------------------------------------------------------------------------------------
# Wrapper
# --------------------------------------------------------------------------------------
def lie_detector_forward(inputs, lengths, params, *, batch_block=None):
    """inputs: (T, B, F) f32, lengths: (B,) int32, params: unpadded dict of weights."""
    T, B, F = inputs.shape
    H = params["w_hh"].shape[0]
    Hp = _round_up(H, 128)     # lane-aligned per-gate width
    Cp = 128                   # lane-dense classifier output (first 2 lanes are real)

    pp = pad_params(params, H, Hp, Cp)
    lengths_2d = lengths.reshape(B, 1).astype(jnp.int32)

    Bb = B if batch_block is None else min(batch_block, B)
    assert B % Bb == 0, "batch_block must divide batch size"
    grid = (pl.cdiv(B, Bb),)

    def full_spec(shape):
        return pl.BlockSpec(shape, lambda i: (0,) * len(shape))

    out_padded = pl.pallas_call(
        lie_detector_kernel,
        out_shape=jax.ShapeDtypeStruct((B, Cp), jnp.float32),
        grid_spec=pltpu.PrefetchScalarGridSpec(
            num_scalar_prefetch=0,
            grid=grid,
            in_specs=[
                pl.BlockSpec((Bb, 1), lambda i: (i, 0)),        # lengths
                pl.BlockSpec((T, Bb, F), lambda i: (0, i, 0)),  # x (time-major)
                full_spec((F, 3 * Hp)),                         # w_ih
                full_spec((Hp, 3 * Hp)),                        # w_hh
                full_spec((1, 3 * Hp)),                         # b_ih
                full_spec((1, 3 * Hp)),                         # b_hh
                full_spec((Hp, Cp)),                            # w_c
                full_spec((1, Cp)),                             # b_c
            ],
            out_specs=pl.BlockSpec((Bb, Cp), lambda i: (i, 0)),
            scratch_shapes=[pltpu.VMEM((T, Bb, 3 * Hp), jnp.float32)],
        ),
        compiler_params=pltpu.CompilerParams(
            dimension_semantics=("parallel",),   # batch blocks split across TCs on v7x
        ),
    )(lengths_2d, inputs,
      pp["w_ih"], pp["w_hh"], pp["b_ih"], pp["b_hh"], pp["w_c"], pp["b_c"])

    return out_padded[:, :2]


# --------------------------------------------------------------------------------------
# Pure-JAX reference (PyTorch GRU semantics, gate order r, z, n) and init
# --------------------------------------------------------------------------------------
def lie_detector_reference(inputs, lengths, params):
    T, B, F = inputs.shape
    H = params["w_hh"].shape[0]
    w_ih, w_hh = params["w_ih"], params["w_hh"]
    b_ih, b_hh = params["b_ih"], params["b_hh"]

    def step(h_prev, x_t):
        gi = x_t @ w_ih + b_ih
        gh = h_prev @ w_hh + b_hh
        r = jax.nn.sigmoid(gi[:, :H] + gh[:, :H])
        z = jax.nn.sigmoid(gi[:, H:2 * H] + gh[:, H:2 * H])
        n = jnp.tanh(gi[:, 2 * H:] + r * gh[:, 2 * H:])
        h_new = (1.0 - z) * n + z * h_prev
        return h_new, h_new

    h0 = jnp.zeros((B, H), jnp.float32)
    _, hs = lax.scan(step, h0, inputs)            # (T, B, H)
    idx = (lengths - 1).astype(jnp.int32)         # (B,)
    last = hs[idx, jnp.arange(B)]                 # (B, H)
    return last @ params["w_c"] + params["b_c"]


def init_params(key, input_size, hidden_size):
    """Deterministic init mimicking PyTorch defaults: U(-1/sqrt(H), 1/sqrt(H))."""
    H = hidden_size
    k = 1.0 / np.sqrt(H)
    keys = jax.random.split(key, 6)
    u = lambda kk, shape: jax.random.uniform(kk, shape, jnp.float32, -k, k)
    return {
        # transposed relative to torch: weight_ih_l0 is (3H, F) -> stored as (F, 3H)
        "w_ih": u(keys[0], (input_size, 3 * H)),
        "w_hh": u(keys[1], (H, 3 * H)),
        "b_ih": u(keys[2], (1, 3 * H)),
        "b_hh": u(keys[3], (1, 3 * H)),
        # classifier: torch Linear(H, 2).weight is (2, H) -> stored as (H, 2)
        "w_c": u(keys[4], (H, 2)),
        "b_c": u(keys[5], (1, 2)),
    }


if __name__ == "__main__":
    T, B, F, H = 8, 8, 16, 32  # seq_len, batch, input_size (MFCC features), hidden_size

    key = jax.random.PRNGKey(0)
    k_x, k_p = jax.random.split(key)
    inputs = jax.random.normal(k_x, (T, B, F), jnp.float32)
    # descending lengths (PyTorch pack_padded_sequence default enforce_sorted=True)
    lengths = jnp.array([8, 8, 7, 6, 5, 4, 3, 2], dtype=jnp.int32)
    params = init_params(k_p, F, H)

    logits = lie_detector_forward(inputs, lengths, params)
    jax.block_until_ready(logits)

    ref = lie_detector_reference(inputs, lengths, params)
    np.testing.assert_allclose(np.asarray(logits), np.asarray(ref), rtol=1e-5, atol=1e-5)

    print("KERNEL_OK")
</pallas_src>

<mosaic_0001>
module attributes {stable_mosaic.version = 11 : i64} {
  func.func @lie_detector_kernel(%arg0: i32, %arg1: memref<8x1xi32, #tpu.memory_space<vmem>>, %arg2: memref<8x8x16xf32, #tpu.memory_space<vmem>>, %arg3: memref<16x384xf32, #tpu.memory_space<vmem>>, %arg4: memref<128x384xf32, #tpu.memory_space<vmem>>, %arg5: memref<1x384xf32, #tpu.memory_space<vmem>>, %arg6: memref<1x384xf32, #tpu.memory_space<vmem>>, %arg7: memref<128x128xf32, #tpu.memory_space<vmem>>, %arg8: memref<1x128xf32, #tpu.memory_space<vmem>>, %arg9: memref<8x128xf32, #tpu.memory_space<vmem>>, %arg10: memref<8x8x384xf32, #tpu.memory_space<vmem>>) attributes {dimension_semantics = [#tpu.dimension_semantics<parallel>], iteration_bounds = array<i64: 1>, scalar_prefetch = 0 : i64, scratch_operands = 1 : i64, tpu.core_type = #tpu.core_type<tc>, window_params = [{transform_indices = @transform_0, window_bounds = array<i64: 8, 1>}, {transform_indices = @transform_1, window_bounds = array<i64: 8, 8, 16>}, {pipeline_mode = #tpu.pipeline_mode<synchronous>, transform_indices = @transform_2, window_bounds = array<i64: 16, 384>}, {pipeline_mode = #tpu.pipeline_mode<synchronous>, transform_indices = @transform_3, window_bounds = array<i64: 128, 384>}, {pipeline_mode = #tpu.pipeline_mode<synchronous>, transform_indices = @transform_4, window_bounds = array<i64: 1, 384>}, {pipeline_mode = #tpu.pipeline_mode<synchronous>, transform_indices = @transform_5, window_bounds = array<i64: 1, 384>}, {pipeline_mode = #tpu.pipeline_mode<synchronous>, transform_indices = @transform_6, window_bounds = array<i64: 128, 128>}, {pipeline_mode = #tpu.pipeline_mode<synchronous>, transform_indices = @transform_7, window_bounds = array<i64: 1, 128>}, {transform_indices = @transform_8, window_bounds = array<i64: 8, 128>}]} {
    %c0 = arith.constant 0 : index
    %c0_0 = arith.constant 0 : index
    %c0_1 = arith.constant 0 : index
    %0 = vector.load %arg2[%c0, %c0_0, %c0_1] : memref<8x8x16xf32, #tpu.memory_space<vmem>>, vector<8x8x16xf32>
    %1 = vector.shape_cast %0 : vector<8x8x16xf32> to vector<64x16xf32>
    %c0_2 = arith.constant 0 : index
    %c0_3 = arith.constant 0 : index
    %2 = vector.load %arg3[%c0_2, %c0_3] : memref<16x384xf32, #tpu.memory_space<vmem>>, vector<16x384xf32>
    %cst = arith.constant dense<0.000000e+00> : vector<64x384xf32>
    %3 = tpu.matmul %1, %2, %cst {dimension_numbers = #tpu.dot_dimension_numbers<[1], [0], [0], [1], [0, 0, 1, 1], [], []>} : vector<64x16xf32>, vector<16x384xf32>, vector<64x384xf32> -> vector<64x384xf32>
    %c0_4 = arith.constant 0 : index
    %c0_5 = arith.constant 0 : index
    %4 = vector.load %arg5[%c0_4, %c0_5] : memref<1x384xf32, #tpu.memory_space<vmem>>, vector<1x384xf32>
    %5 = vector.broadcast %4 : vector<1x384xf32> to vector<64x384xf32>
    %6 = arith.addf %3, %5 : vector<64x384xf32>
    %7 = vector.shape_cast %6 : vector<64x384xf32> to vector<8x8x384xf32>
    %c0_6 = arith.constant 0 : index
    %c0_7 = arith.constant 0 : index
    %c0_8 = arith.constant 0 : index
    %8 = vector.load %arg10[%c0_6, %c0_7, %c0_8] : memref<8x8x384xf32, #tpu.memory_space<vmem>>, vector<8x8x384xf32>
    tpu.vector_store %arg10[%c0_6, %c0_7, %c0_8], %7 {strides = array<i32>} : memref<8x8x384xf32, #tpu.memory_space<vmem>>, vector<8x8x384xf32>,
    %c0_9 = arith.constant 0 : index
    %c0_10 = arith.constant 0 : index
    %9 = vector.load %arg4[%c0_9, %c0_10] : memref<128x384xf32, #tpu.memory_space<vmem>>, vector<128x384xf32>
    %c0_11 = arith.constant 0 : index
    %c0_12 = arith.constant 0 : index
    %10 = vector.load %arg6[%c0_11, %c0_12] : memref<1x384xf32, #tpu.memory_space<vmem>>, vector<1x384xf32>
    %11 = vector.shape_cast %10 : vector<1x384xf32> to vector<1x384xf32>
    %12 = vector.broadcast %11 : vector<1x384xf32> to vector<8x384xf32>
    %c0_13 = arith.constant 0 : index
    %c0_14 = arith.constant 0 : index
    %13 = vector.load %arg1[%c0_13, %c0_14] : memref<8x1xi32, #tpu.memory_space<vmem>>, vector<8x1xi32>
    %c1_i32 = arith.constant 1 : i32
    %14 = vector.broadcast %c1_i32 : i32 to vector<8x1xi32>
    %15 = arith.subi %13, %14 : vector<8x1xi32>
    %cst_15 = arith.constant 0.000000e+00 : f32
    %16 = vector.broadcast %cst_15 : f32 to vector<8x128xf32>
    %cst_16 = arith.constant 0.000000e+00 : f32
    %17 = vector.broadcast %cst_16 : f32 to vector<8x128xf32>
    %c0_i32 = arith.constant 0 : i32
    %18 = arith.index_cast %c0_i32 : i32 to index
    %c0_17 = arith.constant 0 : index
    %c0_18 = arith.constant 0 : index
    %19 = vector.load %arg10[%18, %c0_17, %c0_18] : memref<8x8x384xf32, #tpu.memory_space<vmem>>, vector<1x8x384xf32>
    %20 = vector.shape_cast %19 : vector<1x8x384xf32> to vector<8x384xf32>
    %cst_19 = arith.constant dense<0.000000e+00> : vector<8x384xf32>
    %21 = tpu.matmul %16, %9, %cst_19 {dimension_numbers = #tpu.dot_dimension_numbers<[1], [0], [0], [1], [0, 0, 1, 1], [], []>} : vector<8x128xf32>, vector<128x384xf32>, vector<8x384xf32> -> vector<8x384xf32>
    %22 = arith.addf %21, %12 : vector<8x384xf32>
    %23 = vector.extract_strided_slice %20 {offsets = [0, 0], sizes = [8, 128], strides = [1, 1]} : vector<8x384xf32> to vector<8x128xf32>
    %24 = vector.extract_strided_slice %22 {offsets = [0, 0], sizes = [8, 128], strides = [1, 1]} : vector<8x384xf32> to vector<8x128xf32>
    %25 = arith.addf %23, %24 : vector<8x128xf32>
    %26 = arith.negf %25 : vector<8x128xf32>
    %27 = math.exp %26 : vector<8x128xf32>
    %cst_20 = arith.constant 1.000000e+00 : f32
    %28 = vector.broadcast %cst_20 : f32 to vector<8x128xf32>
    %29 = arith.addf %28, %27 : vector<8x128xf32>
    %30 = arith.divf %28, %29 : vector<8x128xf32>
    %31 = vector.extract_strided_slice %20 {offsets = [0, 128], sizes = [8, 128], strides = [1, 1]} : vector<8x384xf32> to vector<8x128xf32>
    %32 = vector.extract_strided_slice %22 {offsets = [0, 128], sizes = [8, 128], strides = [1, 1]} : vector<8x384xf32> to vector<8x128xf32>
    %33 = arith.addf %31, %32 : vector<8x128xf32>
    %34 = arith.negf %33 : vector<8x128xf32>
    %35 = math.exp %34 : vector<8x128xf32>
    %cst_21 = arith.constant 1.000000e+00 : f32
    %36 = vector.broadcast %cst_21 : f32 to vector<8x128xf32>
    %37 = arith.addf %36, %35 : vector<8x128xf32>
    %38 = arith.divf %36, %37 : vector<8x128xf32>
    %39 = vector.extract_strided_slice %20 {offsets = [0, 256], sizes = [8, 128], strides = [1, 1]} : vector<8x384xf32> to vector<8x128xf32>
    %40 = vector.extract_strided_slice %22 {offsets = [0, 256], sizes = [8, 128], strides = [1, 1]} : vector<8x384xf32> to vector<8x128xf32>
    %41 = arith.mulf %30, %40 : vector<8x128xf32>
    %42 = arith.addf %39, %41 : vector<8x128xf32>
    %43 = math.tanh %42 : vector<8x128xf32>
    %cst_22 = arith.constant 1.000000e+00 : f32
    %44 = vector.broadcast %cst_22 : f32 to vector<8x128xf32>
    %45 = arith.subf %44, %38 : vector<8x128xf32>
    %46 = arith.mulf %45, %43 : vector<8x128xf32>
    %47 = arith.mulf %38, %16 : vector<8x128xf32>
    %48 = arith.addf %46, %47 : vector<8x128xf32>
    %49 = vector.broadcast %c0_i32 : i32 to vector<8x1xi32>
    %50 = arith.cmpi eq, %15, %49 : vector<8x1xi32>
    %51 = vector.shape_cast %50 : vector<8x1xi1> to vector<8x1xi1>
    %52 = vector.broadcast %51 : vector<8x1xi1> to vector<8x128xi1>
    %53 = arith.select %52, %48, %17 : vector<8x128xi1>, vector<8x128xf32>
    %c1_i32_23 = arith.constant 1 : i32
    %54 = arith.index_cast %c1_i32_23 : i32 to index
    %c0_24 = arith.constant 0 : index
    %c0_25 = arith.constant 0 : index
    %55 = vector.load %arg10[%54, %c0_24, %c0_25] : memref<8x8x384xf32, #tpu.memory_space<vmem>>, vector<1x8x384xf32>
    %56 = vector.shape_cast %55 : vector<1x8x384xf32> to vector<8x384xf32>
    %cst_26 = arith.constant dense<0.000000e+00> : vector<8x384xf32>
    %57 = tpu.matmul %48, %9, %cst_26 {dimension_numbers = #tpu.dot_dimension_numbers<[1], [0], [0], [1], [0, 0, 1, 1], [], []>} : vector<8x128xf32>, vector<128x384xf32>, vector<8x384xf32> -> vector<8x384xf32>
    %58 = arith.addf %57, %12 : vector<8x384xf32>
    %59 = vector.extract_strided_slice %56 {offsets = [0, 0], sizes = [8, 128], strides = [1, 1]} : vector<8x384xf32> to vector<8x128xf32>
    %60 = vector.extract_strided_slice %58 {offsets = [0, 0], sizes = [8, 128], strides = [1, 1]} : vector<8x384xf32> to vector<8x128xf32>
    %61 = arith.addf %59, %60 : vector<8x128xf32>
    %62 = arith.negf %61 : vector<8x128xf32>
    %63 = math.exp %62 : vector<8x128xf32>
    %cst_27 = arith.constant 1.000000e+00 : f32
    %64 = vector.broadcast %cst_27 : f32 to vector<8x128xf32>
    %65 = arith.addf %64, %63 : vector<8x128xf32>
    %66 = arith.divf %64, %65 : vector<8x128xf32>
    %67 = vector.extract_strided_slice %56 {offsets = [0, 128], sizes = [8, 128], strides = [1, 1]} : vector<8x384xf32> to vector<8x128xf32>
    %68 = vector.extract_strided_slice %58 {offsets = [0, 128], sizes = [8, 128], strides = [1, 1]} : vector<8x384xf32> to vector<8x128xf32>
    %69 = arith.addf %67, %68 : vector<8x128xf32>
    %70 = arith.negf %69 : vector<8x128xf32>
    %71 = math.exp %70 : vector<8x128xf32>
    %cst_28 = arith.constant 1.000000e+00 : f32
    %72 = vector.broadcast %cst_28 : f32 to vector<8x128xf32>
    %73 = arith.addf %72, %71 : vector<8x128xf32>
    %74 = arith.divf %72, %73 : vector<8x128xf32>
    %75 = vector.extract_strided_slice %56 {offsets = [0, 256], sizes = [8, 128], strides = [1, 1]} : vector<8x384xf32> to vector<8x128xf32>
    %76 = vector.extract_strided_slice %58 {offsets = [0, 256], sizes = [8, 128], strides = [1, 1]} : vector<8x384xf32> to vector<8x128xf32>
    %77 = arith.mulf %66, %76 : vector<8x128xf32>
    %78 = arith.addf %75, %77 : vector<8x128xf32>
    %79 = math.tanh %78 : vector<8x128xf32>
    %cst_29 = arith.constant 1.000000e+00 : f32
    %80 = vector.broadcast %cst_29 : f32 to vector<8x128xf32>
    %81 = arith.subf %80, %74 : vector<8x128xf32>
    %82 = arith.mulf %81, %79 : vector<8x128xf32>
    %83 = arith.mulf %74, %48 : vector<8x128xf32>
    %84 = arith.addf %82, %83 : vector<8x128xf32>
    %85 = vector.broadcast %c1_i32_23 : i32 to vector<8x1xi32>
    %86 = arith.cmpi eq, %15, %85 : vector<8x1xi32>
    %87 = vector.shape_cast %86 : vector<8x1xi1> to vector<8x1xi1>
    %88 = vector.broadcast %87 : vector<8x1xi1> to vector<8x128xi1>
    %89 = arith.select %88, %84, %53 : vector<8x128xi1>, vector<8x128xf32>
    %c2_i32 = arith.constant 2 : i32
    %90 = arith.index_cast %c2_i32 : i32 to index
    %c0_30 = arith.constant 0 : index
    %c0_31 = arith.constant 0 : index
    %91 = vector.load %arg10[%90, %c0_30, %c0_31] : memref<8x8x384xf32, #tpu.memory_space<vmem>>, vector<1x8x384xf32>
    %92 = vector.shape_cast %91 : vector<1x8x384xf32> to vector<8x384xf32>
    %cst_32 = arith.constant dense<0.000000e+00> : vector<8x384xf32>
    %93 = tpu.matmul %84, %9, %cst_32 {dimension_numbers = #tpu.dot_dimension_numbers<[1], [0], [0], [1], [0, 0, 1, 1], [], []>} : vector<8x128xf32>, vector<128x384xf32>, vector<8x384xf32> -> vector<8x384xf32>
    %94 = arith.addf %93, %12 : vector<8x384xf32>
    %95 = vector.extract_strided_slice %92 {offsets = [0, 0], sizes = [8, 128], strides = [1, 1]} : vector<8x384xf32> to vector<8x128xf32>
    %96 = vector.extract_strided_slice %94 {offsets = [0, 0], sizes = [8, 128], strides = [1, 1]} : vector<8x384xf32> to vector<8x128xf32>
    %97 = arith.addf %95, %96 : vector<8x128xf32>
    %98 = arith.negf %97 : vector<8x128xf32>
    %99 = math.exp %98 : vector<8x128xf32>
    %cst_33 = arith.constant 1.000000e+00 : f32
    %100 = vector.broadcast %cst_33 : f32 to vector<8x128xf32>
    %101 = arith.addf %100, %99 : vector<8x128xf32>
    %102 = arith.divf %100, %101 : vector<8x128xf32>
    %103 = vector.extract_strided_slice %92 {offsets = [0, 128], sizes = [8, 128], strides = [1, 1]} : vector<8x384xf32> to vector<8x128xf32>
    %104 = vector.extract_strided_slice %94 {offsets = [0, 128], sizes = [8, 128], strides = [1, 1]} : vector<8x384xf32> to vector<8x128xf32>
    %105 = arith.addf %103, %104 : vector<8x128xf32>
    %106 = arith.negf %105 : vector<8x128xf32>
    %107 = math.exp %106 : vector<8x128xf32>
    %cst_34 = arith.constant 1.000000e+00 : f32
    %108 = vector.broadcast %cst_34 : f32 to vector<8x128xf32>
    %109 = arith.addf %108, %107 : vector<8x128xf32>
    %110 = arith.divf %108, %109 : vector<8x128xf32>
    %111 = vector.extract_strided_slice %92 {offsets = [0, 256], sizes = [8, 128], strides = [1, 1]} : vector<8x384xf32> to vector<8x128xf32>
    %112 = vector.extract_strided_slice %94 {offsets = [0, 256], sizes = [8, 128], strides = [1, 1]} : vector<8x384xf32> to vector<8x128xf32>
    %113 = arith.mulf %102, %112 : vector<8x128xf32>
    %114 = arith.addf %111, %113 : vector<8x128xf32>
    %115 = math.tanh %114 : vector<8x128xf32>
    %cst_35 = arith.constant 1.000000e+00 : f32
    %116 = vector.broadcast %cst_35 : f32 to vector<8x128xf32>
    %117 = arith.subf %116, %110 : vector<8x128xf32>
    %118 = arith.mulf %117, %115 : vector<8x128xf32>
    %119 = arith.mulf %110, %84 : vector<8x128xf32>
    %120 = arith.addf %118, %119 : vector<8x128xf32>
    %121 = vector.broadcast %c2_i32 : i32 to vector<8x1xi32>
    %122 = arith.cmpi eq, %15, %121 : vector<8x1xi32>
    %123 = vector.shape_cast %122 : vector<8x1xi1> to vector<8x1xi1>
    %124 = vector.broadcast %123 : vector<8x1xi1> to vector<8x128xi1>
    %125 = arith.select %124, %120, %89 : vector<8x128xi1>, vector<8x128xf32>
    %c3_i32 = arith.constant 3 : i32
    %126 = arith.index_cast %c3_i32 : i32 to index
    %c0_36 = arith.constant 0 : index
    %c0_37 = arith.constant 0 : index
    %127 = vector.load %arg10[%126, %c0_36, %c0_37] : memref<8x8x384xf32, #tpu.memory_space<vmem>>, vector<1x8x384xf32>
    %128 = vector.shape_cast %127 : vector<1x8x384xf32> to vector<8x384xf32>
    %cst_38 = arith.constant dense<0.000000e+00> : vector<8x384xf32>
    %129 = tpu.matmul %120, %9, %cst_38 {dimension_numbers = #tpu.dot_dimension_numbers<[1], [0], [0], [1], [0, 0, 1, 1], [], []>} : vector<8x128xf32>, vector<128x384xf32>, vector<8x384xf32> -> vector<8x384xf32>
    %130 = arith.addf %129, %12 : vector<8x384xf32>
    %131 = vector.extract_strided_slice %128 {offsets = [0, 0], sizes = [8, 128], strides = [1, 1]} : vector<8x384xf32> to vector<8x128xf32>
    %132 = vector.extract_strided_slice %130 {offsets = [0, 0], sizes = [8, 128], strides = [1, 1]} : vector<8x384xf32> to vector<8x128xf32>
    %133 = arith.addf %131, %132 : vector<8x128xf32>
    %134 = arith.negf %133 : vector<8x128xf32>
    %135 = math.exp %134 : vector<8x128xf32>
    %cst_39 = arith.constant 1.000000e+00 : f32
    %136 = vector.broadcast %cst_39 : f32 to vector<8x128xf32>
    %137 = arith.addf %136, %135 : vector<8x128xf32>
    %138 = arith.divf %136, %137 : vector<8x128xf32>
    %139 = vector.extract_strided_slice %128 {offsets = [0, 128], sizes = [8, 128], strides = [1, 1]} : vector<8x384xf32> to vector<8x128xf32>
    %140 = vector.extract_strided_slice %130 {offsets = [0, 128], sizes = [8, 128], strides = [1, 1]} : vector<8x384xf32> to vector<8x128xf32>
    %141 = arith.addf %139, %140 : vector<8x128xf32>
    %142 = arith.negf %141 : vector<8x128xf32>
    %143 = math.exp %142 : vector<8x128xf32>
    %cst_40 = arith.constant 1.000000e+00 : f32
    %144 = vector.broadcast %cst_40 : f32 to vector<8x128xf32>
    %145 = arith.addf %144, %143 : vector<8x128xf32>
    %146 = arith.divf %144, %145 : vector<8x128xf32>
    %147 = vector.extract_strided_slice %128 {offsets = [0, 256], sizes = [8, 128], strides = [1, 1]} : vector<8x384xf32> to vector<8x128xf32>
    %148 = vector.extract_strided_slice %130 {offsets = [0, 256], sizes = [8, 128], strides = [1, 1]} : vector<8x384xf32> to vector<8x128xf32>
    %149 = arith.mulf %138, %148 : vector<8x128xf32>
    %150 = arith.addf %147, %149 : vector<8x128xf32>
    %151 = math.tanh %150 : vector<8x128xf32>
    %cst_41 = arith.constant 1.000000e+00 : f32
    %152 = vector.broadcast %cst_41 : f32 to vector<8x128xf32>
    %153 = arith.subf %152, %146 : vector<8x128xf32>
    %154 = arith.mulf %153, %151 : vector<8x128xf32>
    %155 = arith.mulf %146, %120 : vector<8x128xf32>
    %156 = arith.addf %154, %155 : vector<8x128xf32>
    %157 = vector.broadcast %c3_i32 : i32 to vector<8x1xi32>
    %158 = arith.cmpi eq, %15, %157 : vector<8x1xi32>
    %159 = vector.shape_cast %158 : vector<8x1xi1> to vector<8x1xi1>
    %160 = vector.broadcast %159 : vector<8x1xi1> to vector<8x128xi1>
    %161 = arith.select %160, %156, %125 : vector<8x128xi1>, vector<8x128xf32>
    %c4_i32 = arith.constant 4 : i32
    %162 = arith.index_cast %c4_i32 : i32 to index
    %c0_42 = arith.constant 0 : index
    %c0_43 = arith.constant 0 : index
    %163 = vector.load %arg10[%162, %c0_42, %c0_43] : memref<8x8x384xf32, #tpu.memory_space<vmem>>, vector<1x8x384xf32>
    %164 = vector.shape_cast %163 : vector<1x8x384xf32> to vector<8x384xf32>
    %cst_44 = arith.constant dense<0.000000e+00> : vector<8x384xf32>
    %165 = tpu.matmul %156, %9, %cst_44 {dimension_numbers = #tpu.dot_dimension_numbers<[1], [0], [0], [1], [0, 0, 1, 1], [], []>} : vector<8x128xf32>, vector<128x384xf32>, vector<8x384xf32> -> vector<8x384xf32>
    %166 = arith.addf %165, %12 : vector<8x384xf32>
    %167 = vector.extract_strided_slice %164 {offsets = [0, 0], sizes = [8, 128], strides = [1, 1]} : vector<8x384xf32> to vector<8x128xf32>
    %168 = vector.extract_strided_slice %166 {offsets = [0, 0], sizes = [8, 128], strides = [1, 1]} : vector<8x384xf32> to vector<8x128xf32>
    %169 = arith.addf %167, %168 : vector<8x128xf32>
    %170 = arith.negf %169 : vector<8x128xf32>
    %171 = math.exp %170 : vector<8x128xf32>
    %cst_45 = arith.constant 1.000000e+00 : f32
    %172 = vector.broadcast %cst_45 : f32 to vector<8x128xf32>
    %173 = arith.addf %172, %171 : vector<8x128xf32>
    %174 = arith.divf %172, %173 : vector<8x128xf32>
    %175 = vector.extract_strided_slice %164 {offsets = [0, 128], sizes = [8, 128], strides = [1, 1]} : vector<8x384xf32> to vector<8x128xf32>
    %176 = vector.extract_strided_slice %166 {offsets = [0, 128], sizes = [8, 128], strides = [1, 1]} : vector<8x384xf32> to vector<8x128xf32>
    %177 = arith.addf %175, %176 : vector<8x128xf32>
    %178 = arith.negf %177 : vector<8x128xf32>
    %179 = math.exp %178 : vector<8x128xf32>
    %cst_46 = arith.constant 1.000000e+00 : f32
    %180 = vector.broadcast %cst_46 : f32 to vector<8x128xf32>
    %181 = arith.addf %180, %179 : vector<8x128xf32>
    %182 = arith.divf %180, %181 : vector<8x128xf32>
    %183 = vector.extract_strided_slice %164 {offsets = [0, 256], sizes = [8, 128], strides = [1, 1]} : vector<8x384xf32> to vector<8x128xf32>
    %184 = vector.extract_strided_slice %166 {offsets = [0, 256], sizes = [8, 128], strides = [1, 1]} : vector<8x384xf32> to vector<8x128xf32>
    %185 = arith.mulf %174, %184 : vector<8x128xf32>
    %186 = arith.addf %183, %185 : vector<8x128xf32>
    %187 = math.tanh %186 : vector<8x128xf32>
    %cst_47 = arith.constant 1.000000e+00 : f32
    %188 = vector.broadcast %cst_47 : f32 to vector<8x128xf32>
    %189 = arith.subf %188, %182 : vector<8x128xf32>
    %190 = arith.mulf %189, %187 : vector<8x128xf32>
    %191 = arith.mulf %182, %156 : vector<8x128xf32>
    %192 = arith.addf %190, %191 : vector<8x128xf32>
    %193 = vector.broadcast %c4_i32 : i32 to vector<8x1xi32>
    %194 = arith.cmpi eq, %15, %193 : vector<8x1xi32>
    %195 = vector.shape_cast %194 : vector<8x1xi1> to vector<8x1xi1>
    %196 = vector.broadcast %195 : vector<8x1xi1> to vector<8x128xi1>
    %197 = arith.select %196, %192, %161 : vector<8x128xi1>, vector<8x128xf32>
    %c5_i32 = arith.constant 5 : i32
    %198 = arith.index_cast %c5_i32 : i32 to index
    %c0_48 = arith.constant 0 : index
    %c0_49 = arith.constant 0 : index
    %199 = vector.load %arg10[%198, %c0_48, %c0_49] : memref<8x8x384xf32, #tpu.memory_space<vmem>>, vector<1x8x384xf32>
    %200 = vector.shape_cast %199 : vector<1x8x384xf32> to vector<8x384xf32>
    %cst_50 = arith.constant dense<0.000000e+00> : vector<8x384xf32>
    %201 = tpu.matmul %192, %9, %cst_50 {dimension_numbers = #tpu.dot_dimension_numbers<[1], [0], [0], [1], [0, 0, 1, 1], [], []>} : vector<8x128xf32>, vector<128x384xf32>, vector<8x384xf32> -> vector<8x384xf32>
    %202 = arith.addf %201, %12 : vector<8x384xf32>
    %203 = vector.extract_strided_slice %200 {offsets = [0, 0], sizes = [8, 128], strides = [1, 1]} : vector<8x384xf32> to vector<8x128xf32>
    %204 = vector.extract_strided_slice %202 {offsets = [0, 0], sizes = [8, 128], strides = [1, 1]} : vector<8x384xf32> to vector<8x128xf32>
    %205 = arith.addf %203, %204 : vector<8x128xf32>
    %206 = arith.negf %205 : vector<8x128xf32>
    %207 = math.exp %206 : vector<8x128xf32>
    %cst_51 = arith.constant 1.000000e+00 : f32
    %208 = vector.broadcast %cst_51 : f32 to vector<8x128xf32>
    %209 = arith.addf %208, %207 : vector<8x128xf32>
    %210 = arith.divf %208, %209 : vector<8x128xf32>
    %211 = vector.extract_strided_slice %200 {offsets = [0, 128], sizes = [8, 128], strides = [1, 1]} : vector<8x384xf32> to vector<8x128xf32>
    %212 = vector.extract_strided_slice %202 {offsets = [0, 128], sizes = [8, 128], strides = [1, 1]} : vector<8x384xf32> to vector<8x128xf32>
    %213 = arith.addf %211, %212 : vector<8x128xf32>
    %214 = arith.negf %213 : vector<8x128xf32>
    %215 = math.exp %214 : vector<8x128xf32>
    %cst_52 = arith.constant 1.000000e+00 : f32
    %216 = vector.broadcast %cst_52 : f32 to vector<8x128xf32>
    %217 = arith.addf %216, %215 : vector<8x128xf32>
    %218 = arith.divf %216, %217 : vector<8x128xf32>
    %219 = vector.extract_strided_slice %200 {offsets = [0, 256], sizes = [8, 128], strides = [1, 1]} : vector<8x384xf32> to vector<8x128xf32>
    %220 = vector.extract_strided_slice %202 {offsets = [0, 256], sizes = [8, 128], strides = [1, 1]} : vector<8x384xf32> to vector<8x128xf32>
    %221 = arith.mulf %210, %220 : vector<8x128xf32>
    %222 = arith.addf %219, %221 : vector<8x128xf32>
    %223 = math.tanh %222 : vector<8x128xf32>
    %cst_53 = arith.constant 1.000000e+00 : f32
    %224 = vector.broadcast %cst_53 : f32 to vector<8x128xf32>
    %225 = arith.subf %224, %218 : vector<8x128xf32>
    %226 = arith.mulf %225, %223 : vector<8x128xf32>
    %227 = arith.mulf %218, %192 : vector<8x128xf32>
    %228 = arith.addf %226, %227 : vector<8x128xf32>
    %229 = vector.broadcast %c5_i32 : i32 to vector<8x1xi32>
    %230 = arith.cmpi eq, %15, %229 : vector<8x1xi32>
    %231 = vector.shape_cast %230 : vector<8x1xi1> to vector<8x1xi1>
    %232 = vector.broadcast %231 : vector<8x1xi1> to vector<8x128xi1>
    %233 = arith.select %232, %228, %197 : vector<8x128xi1>, vector<8x128xf32>
    %c6_i32 = arith.constant 6 : i32
    %234 = arith.index_cast %c6_i32 : i32 to index
    %c0_54 = arith.constant 0 : index
    %c0_55 = arith.constant 0 : index
    %235 = vector.load %arg10[%234, %c0_54, %c0_55] : memref<8x8x384xf32, #tpu.memory_space<vmem>>, vector<1x8x384xf32>
    %236 = vector.shape_cast %235 : vector<1x8x384xf32> to vector<8x384xf32>
    %cst_56 = arith.constant dense<0.000000e+00> : vector<8x384xf32>
    %237 = tpu.matmul %228, %9, %cst_56 {dimension_numbers = #tpu.dot_dimension_numbers<[1], [0], [0], [1], [0, 0, 1, 1], [], []>} : vector<8x128xf32>, vector<128x384xf32>, vector<8x384xf32> -> vector<8x384xf32>
    %238 = arith.addf %237, %12 : vector<8x384xf32>
    %239 = vector.extract_strided_slice %236 {offsets = [0, 0], sizes = [8, 128], strides = [1, 1]} : vector<8x384xf32> to vector<8x128xf32>
    %240 = vector.extract_strided_slice %238 {offsets = [0, 0], sizes = [8, 128], strides = [1, 1]} : vector<8x384xf32> to vector<8x128xf32>
    %241 = arith.addf %239, %240 : vector<8x128xf32>
    %242 = arith.negf %241 : vector<8x128xf32>
    %243 = math.exp %242 : vector<8x128xf32>
    %cst_57 = arith.constant 1.000000e+00 : f32
    %244 = vector.broadcast %cst_57 : f32 to vector<8x128xf32>
    %245 = arith.addf %244, %243 : vector<8x128xf32>
    %246 = arith.divf %244, %245 : vector<8x128xf32>
    %247 = vector.extract_strided_slice %236 {offsets = [0, 128], sizes = [8, 128], strides = [1, 1]} : vector<8x384xf32> to vector<8x128xf32>
    %248 = vector.extract_strided_slice %238 {offsets = [0, 128], sizes = [8, 128], strides = [1, 1]} : vector<8x384xf32> to vector<8x128xf32>
    %249 = arith.addf %247, %248 : vector<8x128xf32>
    %250 = arith.negf %249 : vector<8x128xf32>
    %251 = math.exp %250 : vector<8x128xf32>
    %cst_58 = arith.constant 1.000000e+00 : f32
    %252 = vector.broadcast %cst_58 : f32 to vector<8x128xf32>
    %253 = arith.addf %252, %251 : vector<8x128xf32>
    %254 = arith.divf %252, %253 : vector<8x128xf32>
    %255 = vector.extract_strided_slice %236 {offsets = [0, 256], sizes = [8, 128], strides = [1, 1]} : vector<8x384xf32> to vector<8x128xf32>
    %256 = vector.extract_strided_slice %238 {offsets = [0, 256], sizes = [8, 128], strides = [1, 1]} : vector<8x384xf32> to vector<8x128xf32>
    %257 = arith.mulf %246, %256 : vector<8x128xf32>
    %258 = arith.addf %255, %257 : vector<8x128xf32>
    %259 = math.tanh %258 : vector<8x128xf32>
    %cst_59 = arith.constant 1.000000e+00 : f32
    %260 = vector.broadcast %cst_59 : f32 to vector<8x128xf32>
    %261 = arith.subf %260, %254 : vector<8x128xf32>
    %262 = arith.mulf %261, %259 : vector<8x128xf32>
    %263 = arith.mulf %254, %228 : vector<8x128xf32>
    %264 = arith.addf %262, %263 : vector<8x128xf32>
    %265 = vector.broadcast %c6_i32 : i32 to vector<8x1xi32>
    %266 = arith.cmpi eq, %15, %265 : vector<8x1xi32>
    %267 = vector.shape_cast %266 : vector<8x1xi1> to vector<8x1xi1>
    %268 = vector.broadcast %267 : vector<8x1xi1> to vector<8x128xi1>
    %269 = arith.select %268, %264, %233 : vector<8x128xi1>, vector<8x128xf32>
    %c7_i32 = arith.constant 7 : i32
    %270 = arith.index_cast %c7_i32 : i32 to index
    %c0_60 = arith.constant 0 : index
    %c0_61 = arith.constant 0 : index
    %271 = vector.load %arg10[%270, %c0_60, %c0_61] : memref<8x8x384xf32, #tpu.memory_space<vmem>>, vector<1x8x384xf32>
    %272 = vector.shape_cast %271 : vector<1x8x384xf32> to vector<8x384xf32>
    %cst_62 = arith.constant dense<0.000000e+00> : vector<8x384xf32>
    %273 = tpu.matmul %264, %9, %cst_62 {dimension_numbers = #tpu.dot_dimension_numbers<[1], [0], [0], [1], [0, 0, 1, 1], [], []>} : vector<8x128xf32>, vector<128x384xf32>, vector<8x384xf32> -> vector<8x384xf32>
    %274 = arith.addf %273, %12 : vector<8x384xf32>
    %275 = vector.extract_strided_slice %272 {offsets = [0, 0], sizes = [8, 128], strides = [1, 1]} : vector<8x384xf32> to vector<8x128xf32>
    %276 = vector.extract_strided_slice %274 {offsets = [0, 0], sizes = [8, 128], strides = [1, 1]} : vector<8x384xf32> to vector<8x128xf32>
    %277 = arith.addf %275, %276 : vector<8x128xf32>
    %278 = arith.negf %277 : vector<8x128xf32>
    %279 = math.exp %278 : vector<8x128xf32>
    %cst_63 = arith.constant 1.000000e+00 : f32
    %280 = vector.broadcast %cst_63 : f32 to vector<8x128xf32>
    %281 = arith.addf %280, %279 : vector<8x128xf32>
    %282 = arith.divf %280, %281 : vector<8x128xf32>
    %283 = vector.extract_strided_slice %272 {offsets = [0, 128], sizes = [8, 128], strides = [1, 1]} : vector<8x384xf32> to vector<8x128xf32>
    %284 = vector.extract_strided_slice %274 {offsets = [0, 128], sizes = [8, 128], strides = [1, 1]} : vector<8x384xf32> to vector<8x128xf32>
    %285 = arith.addf %283, %284 : vector<8x128xf32>
    %286 = arith.negf %285 : vector<8x128xf32>
    %287 = math.exp %286 : vector<8x128xf32>
    %cst_64 = arith.constant 1.000000e+00 : f32
    %288 = vector.broadcast %cst_64 : f32 to vector<8x128xf32>
    %289 = arith.addf %288, %287 : vector<8x128xf32>
    %290 = arith.divf %288, %289 : vector<8x128xf32>
    %291 = vector.extract_strided_slice %272 {offsets = [0, 256], sizes = [8, 128], strides = [1, 1]} : vector<8x384xf32> to vector<8x128xf32>
    %292 = vector.extract_strided_slice %274 {offsets = [0, 256], sizes = [8, 128], strides = [1, 1]} : vector<8x384xf32> to vector<8x128xf32>
    %293 = arith.mulf %282, %292 : vector<8x128xf32>
    %294 = arith.addf %291, %293 : vector<8x128xf32>
    %295 = math.tanh %294 : vector<8x128xf32>
    %cst_65 = arith.constant 1.000000e+00 : f32
    %296 = vector.broadcast %cst_65 : f32 to vector<8x128xf32>
    %297 = arith.subf %296, %290 : vector<8x128xf32>
    %298 = arith.mulf %297, %295 : vector<8x128xf32>
    %299 = arith.mulf %290, %264 : vector<8x128xf32>
    %300 = arith.addf %298, %299 : vector<8x128xf32>
    %301 = vector.broadcast %c7_i32 : i32 to vector<8x1xi32>
    %302 = arith.cmpi eq, %15, %301 : vector<8x1xi32>
    %303 = vector.shape_cast %302 : vector<8x1xi1> to vector<8x1xi1>
    %304 = vector.broadcast %303 : vector<8x1xi1> to vector<8x128xi1>
    %305 = arith.select %304, %300, %269 : vector<8x128xi1>, vector<8x128xf32>
    %c8_i32 = arith.constant 8 : i32
    %c0_66 = arith.constant 0 : index
    %c0_67 = arith.constant 0 : index
    %306 = vector.load %arg7[%c0_66, %c0_67] : memref<128x128xf32, #tpu.memory_space<vmem>>, vector<128x128xf32>
    %cst_68 = arith.constant dense<0.000000e+00> : vector<8x128xf32>
    %307 = tpu.matmul %305, %306, %cst_68 {dimension_numbers = #tpu.dot_dimension_numbers<[1], [0], [0], [1], [0, 0, 1, 1], [], []>} : vector<8x128xf32>, vector<128x128xf32>, vector<8x128xf32> -> vector<8x128xf32>
    %c0_69 = arith.constant 0 : index
    %c0_70 = arith.constant 0 : index
    %308 = vector.load %arg8[%c0_69, %c0_70] : memref<1x128xf32, #tpu.memory_space<vmem>>, vector<1x128xf32>
    %309 = vector.broadcast %308 : vector<1x128xf32> to vector<8x128xf32>
    %310 = arith.addf %307, %309 : vector<8x128xf32>
    %c0_71 = arith.constant 0 : index
    %c0_72 = arith.constant 0 : index
    %311 = vector.load %arg9[%c0_71, %c0_72] : memref<8x128xf32, #tpu.memory_space<vmem>>, vector<8x128xf32>
    tpu.vector_store %arg9[%c0_71, %c0_72], %310 {strides = array<i32>} : memref<8x128xf32, #tpu.memory_space<vmem>>, vector<8x128xf32>,
    return
  }
  func.func @transform_0(%arg0: i32) -> (i32, i32) {
    %c0_i32 = arith.constant 0 : i32
    %c0_i32_0 = arith.constant 0 : i32
    return %arg0, %c0_i32 : i32, i32
  }
  func.func @transform_1(%arg0: i32) -> (i32, i32, i32) {
    %c0_i32 = arith.constant 0 : i32
    %c0_i32_0 = arith.constant 0 : i32
    %c0_i32_1 = arith.constant 0 : i32
    return %c0_i32, %arg0, %c0_i32_0 : i32, i32, i32
  }
  func.func @transform_2(%arg0: i32) -> (i32, i32) {
    %c0_i32 = arith.constant 0 : i32
    %c0_i32_0 = arith.constant 0 : i32
    %c0_i32_1 = arith.constant 0 : i32
    return %c0_i32, %c0_i32_0 : i32, i32
  }
  func.func @transform_3(%arg0: i32) -> (i32, i32) {
    %c0_i32 = arith.constant 0 : i32
    %c0_i32_0 = arith.constant 0 : i32
    %c0_i32_1 = arith.constant 0 : i32
    return %c0_i32, %c0_i32_0 : i32, i32
  }
  func.func @transform_4(%arg0: i32) -> (i32, i32) {
    %c0_i32 = arith.constant 0 : i32
    %c0_i32_0 = arith.constant 0 : i32
    %c0_i32_1 = arith.constant 0 : i32
    return %c0_i32, %c0_i32_0 : i32, i32
  }
  func.func @transform_5(%arg0: i32) -> (i32, i32) {
    %c0_i32 = arith.constant 0 : i32
    %c0_i32_0 = arith.constant 0 : i32
    %c0_i32_1 = arith.constant 0 : i32
    return %c0_i32, %c0_i32_0 : i32, i32
  }
  func.func @transform_6(%arg0: i32) -> (i32, i32) {
    %c0_i32 = arith.constant 0 : i32
    %c0_i32_0 = arith.constant 0 : i32
    %c0_i32_1 = arith.constant 0 : i32
    return %c0_i32, %c0_i32_0 : i32, i32
  }
  func.func @transform_7(%arg0: i32) -> (i32, i32) {
    %c0_i32 = arith.constant 0 : i32
    %c0_i32_0 = arith.constant 0 : i32
    %c0_i32_1 = arith.constant 0 : i32
    return %c0_i32, %c0_i32_0 : i32, i32
  }
  func.func @transform_8(%arg0: i32) -> (i32, i32) {
    %c0_i32 = arith.constant 0 : i32
    %c0_i32_0 = arith.constant 0 : i32
    return %arg0, %c0_i32 : i32, i32
  }
}

</mosaic_0001>

<llo_original>
// kernel: tpu_custom_call.1
$region0: #{tpu_custom_call.1}
  #allocation0 [shape = 'u32[]', space=smem, size = 0x4, offset = 0x4, fixed_abs, tag = 'smem constant byte address 0x4 - core index']
  #allocation1 [shape = 'u32[144,128]{1,0:T(1,128)}', space=vmem, size = 0x12000, scoped, tag = 'internal scratch']
  #allocation2 [shape = 'f32[8,8,384]{2,1,0:T(8,128)}', space=vmem, size = 0x18000, scoped, tag = 'scratch operand']
  %s0 = inlined_call_operand.vmem [shape: s32[8,1], index: 0, kind: input, shape index: {}]
  %s1 = inlined_call_operand.hbm [shape: f32[8,8,16], index: 1, kind: input, shape index: {}]
  %s2 = inlined_call_operand.hbm [shape: f32[16,384], index: 2, kind: input, shape index: {}]
  %s3 = inlined_call_operand.hbm [shape: f32[128,384], index: 3, kind: input, shape index: {}]
  %s4 = inlined_call_operand.vmem [shape: f32[1,384], index: 4, kind: input, shape index: {}]
  %s5 = inlined_call_operand.vmem [shape: f32[1,384], index: 5, kind: input, shape index: {}]
  %s6 = inlined_call_operand.hbm [shape: f32[128,128], index: 6, kind: input, shape index: {}]
  %s7 = inlined_call_operand.vmem [shape: f32[1,128], index: 7, kind: input, shape index: {}]
  %s8 = inlined_call_operand.hbm [shape: f32[8,128], index: 8, kind: output, shape index: {}]
  %s9 = sld [smem:[#allocation0]]
  $region58: #{tpu_custom_call.1} parent=0
    _
  %s11 = ssub.s32 1, %s9
  %s12 = scalar_select 0, %s11, %s9
  $region1: #{tpu_custom_call.1} parent=0
    #allocation3 [shape = 'u8[32768]{0}', space=vmem, size = 0x8000, scoped, tag = 'input window, operand 1, single buffered']
    #allocation4 [shape = 's32[1]{0}', space=sflag, size = 0x4, scoped, tag = 'scoped memory for tpu_custom_call.1']
    #allocation5 [shape = 's32[1]{0}', space=sflag, size = 0x4, scoped, tag = 'scoped memory for tpu_custom_call.1']
    #allocation6 [shape = 'u8[24576]{0}', space=vmem, size = 0x6000, scoped, tag = 'input window, operand 2, single buffered']
    #allocation7 [shape = 's32[1]{0}', space=sflag, size = 0x4, scoped, tag = 'scoped memory for tpu_custom_call.1']
    #allocation8 [shape = 'u8[196608]{0}', space=vmem, size = 0x30000, scoped, tag = 'input window, operand 3, single buffered']
    #allocation9 [shape = 'u8[65536]{0}', space=vmem, size = 0x10000, scoped, tag = 'input window, operand 6, single buffered']
    #allocation10 [shape = 's32[1]{0}', space=sflag, size = 0x4, scoped, tag = 'scoped memory for tpu_custom_call.1']
    #allocation11 [shape = 'u8[4096]{0}', space=vmem, size = 0x1000, scoped, tag = 'output window, operand 0, single buffered']
    %13 = vsyncpa [#allocation4], 0
    %14 = vsyncpa [#allocation7], 0
    %15 = vsyncpa [#allocation10], 0
    %16 = vsyncpa [#allocation5], 0
    // Predicated region
    $region2: #{tpu_custom_call.1} parent=1 // pred_check
      _
    $region3: #{tpu_custom_call.1} parent=1 // pred_check_branch
      %18 = sbr.rel (0) target = $region5
    $region4: #{tpu_custom_call.1} parent=1 // pred_region
      _
    $region5: #{tpu_custom_call.1} parent=1 // pred_fallthru
      _
    // Predicated region
    $region6: #{tpu_custom_call.1} parent=1 // pred_check
      _
    $region7: #{tpu_custom_call.1} parent=1 // pred_check_branch
      %20 = sbr.rel (0) target = $region9
    $region8: #{tpu_custom_call.1} parent=1 // pred_region
      %s22 = ssub.s32 1024, 1024
      %23 = vsyncadd [#allocation4], %s22
      %s24 = sshll.u32 [#allocation3], 4
      %s25 = int_to_ptr.vmem [resolvable:$true] %s24
      %30 = dma.hbm_to_vmem [thread:$0]  %s1, 1024, %s25, [#allocation4], 128, 128, 8
    $region9: #{tpu_custom_call.1} parent=1 // pred_fallthru
      _
    // Predicated region
    $region10: #{tpu_custom_call.1} parent=1 // pred_check
      _
    $region11: #{tpu_custom_call.1} parent=1 // pred_check_branch
      %32 = sbr.rel (0) target = $region13
    $region12: #{tpu_custom_call.1} parent=1 // pred_region
      %s34 = ssub.s32 768, 768
      %35 = vsyncadd [#allocation7], %s34
      %s36 = sshll.u32 [#allocation6], 4
      %s37 = int_to_ptr.vmem [resolvable:$true] %s36
      %42 = dma.hbm_to_vmem [thread:$0]  %s2, 768, %s37, [#allocation7], 384, 384, 24
    $region13: #{tpu_custom_call.1} parent=1 // pred_fallthru
      _
    // Predicated region
    $region14: #{tpu_custom_call.1} parent=1 // pred_check
      _
    $region15: #{tpu_custom_call.1} parent=1 // pred_check_branch
      %44 = sbr.rel (0) target = $region17
    $region16: #{tpu_custom_call.1} parent=1 // pred_region
      %s46 = ssub.s32 6144, 6144
      %47 = vsyncadd [#allocation7], %s46
      %s48 = sshll.u32 [#allocation8], 4
      %s49 = int_to_ptr.vmem [resolvable:$true] %s48
      %54 = dma.hbm_to_vmem [thread:$0]  %s3, 6144, %s49, [#allocation7], 384, 384, 24
    $region17: #{tpu_custom_call.1} parent=1 // pred_fallthru
      _
    // Predicated region
    $region18: #{tpu_custom_call.1} parent=1 // pred_check
      _
    $region19: #{tpu_custom_call.1} parent=1 // pred_check_branch
      %56 = sbr.rel (0) target = $region21
    $region20: #{tpu_custom_call.1} parent=1 // pred_region
      _
    $region21: #{tpu_custom_call.1} parent=1 // pred_fallthru
      _
    // Predicated region
    $region22: #{tpu_custom_call.1} parent=1 // pred_check
      _
    $region23: #{tpu_custom_call.1} parent=1 // pred_check_branch
      %58 = sbr.rel (0) target = $region25
    $region24: #{tpu_custom_call.1} parent=1 // pred_region
      _
    $region25: #{tpu_custom_call.1} parent=1 // pred_fallthru
      _
    // Predicated region
    $region26: #{tpu_custom_call.1} parent=1 // pred_check
      _
    $region27: #{tpu_custom_call.1} parent=1 // pred_check_branch
      %60 = sbr.rel (0) target = $region29
    $region28: #{tpu_custom_call.1} parent=1 // pred_region
      %s62 = ssub.s32 2048, 2048
      %63 = vsyncadd [#allocation10], %s62
      %s64 = sshll.u32 [#allocation9], 4
      %s65 = int_to_ptr.vmem [resolvable:$true] %s64
      %70 = dma.hbm_to_vmem [thread:$0]  %s6, 2048, %s65, [#allocation10], 128, 128, 8
    $region29: #{tpu_custom_call.1} parent=1 // pred_fallthru
      _
    // Predicated region
    $region30: #{tpu_custom_call.1} parent=1 // pred_check
      _
    $region31: #{tpu_custom_call.1} parent=1 // pred_check_branch
      %72 = sbr.rel (0) target = $region33
    $region32: #{tpu_custom_call.1} parent=1 // pred_region
      _
    $region33: #{tpu_custom_call.1} parent=1 // pred_fallthru
      _
    // Predicated region
    $region34: #{tpu_custom_call.1} parent=1 // pred_check
      _
    $region35: #{tpu_custom_call.1} parent=1 // pred_check_branch
      %74 = sbr.rel (0) target = $region37
    $region36: #{tpu_custom_call.1} parent=1 // pred_region
      %75 = dma.done [#allocation4], 1024
    $region37: #{tpu_custom_call.1} parent=1 // pred_fallthru
      _
    // Predicated region
    $region38: #{tpu_custom_call.1} parent=1 // pred_check
      _
    $region39: #{tpu_custom_call.1} parent=1 // pred_check_branch
      %77 = sbr.rel (0) target = $region41
    $region40: #{tpu_custom_call.1} parent=1 // pred_region
      %78 = dma.done [#allocation7], 768
    $region41: #{tpu_custom_call.1} parent=1 // pred_fallthru
      _
    // Predicated region
    $region42: #{tpu_custom_call.1} parent=1 // pred_check
      _
    $region43: #{tpu_custom_call.1} parent=1 // pred_check_branch
      %80 = sbr.rel (0) target = $region45
    $region44: #{tpu_custom_call.1} parent=1 // pred_region
      %81 = dma.done [#allocation7], 6144
    $region45: #{tpu_custom_call.1} parent=1 // pred_fallthru
      _
    // Predicated region
    $region46: #{tpu_custom_call.1} parent=1 // pred_check
      _
    $region47: #{tpu_custom_call.1} parent=1 // pred_check_branch
      %83 = sbr.rel (0) target = $region49
    $region48: #{tpu_custom_call.1} parent=1 // pred_region
      %84 = dma.done [#allocation10], 2048
    $region49: #{tpu_custom_call.1} parent=1 // pred_fallthru
      _
    %v85 = vld [vmem:[#allocation3] sm:$0xff]
    %v86 = vld [vmem:[#allocation3 + $0x8] sm:$0xff]
    %v87 = vld [vmem:[#allocation3 + $0x10] sm:$0xff]
    %v88 = vld [vmem:[#allocation3 + $0x18] sm:$0xff]
    %v89 = vld [vmem:[#allocation3 + $0x20] sm:$0xff]
    %v90 = vld [vmem:[#allocation3 + $0x28] sm:$0xff]
    %v91 = vld [vmem:[#allocation3 + $0x30] sm:$0xff]
    %v92 = vld [vmem:[#allocation3 + $0x38] sm:$0xff]
    %v93 = vld [vmem:[#allocation6] sm:$0xff]
    %v94 = vld [vmem:[#allocation6 + $0x8] sm:$0xff]
    %v95 = vld [vmem:[#allocation6 + $0x10] sm:$0xff]
    %v96 = vld [vmem:[#allocation6 + $0x18] sm:$0xff]
    %v97 = vld [vmem:[#allocation6 + $0x20] sm:$0xff]
    %v98 = vld [vmem:[#allocation6 + $0x28] sm:$0xff]
    %v99 = vld [vmem:[%s4] sm:$0x7]
    %v101 = vlaneseq
    %v102 = vshrl.u32 %v101, 7
    %v103 = vsub.s32 0, %v102
    %v104 = vrot.slane %v99, %v103
    %v105 = vlaneseq
    %v106 = vshrl.u32 %v105, 7
    %v107 = vsub.s32 1, %v106
    %v108 = vrot.slane %v99, %v107
    %v109 = vlaneseq
    %v110 = vshrl.u32 %v109, 7
    %v111 = vsub.s32 2, %v110
    %v112 = vrot.slane %v99, %v111
    %vm116 = vcmask 130048
    %v118 = vsel %vm116, %v85, 0
    %v121 = vsel %vm116, %v86, 0
    %v124 = vsel %vm116, %v87, 0
    %v127 = vsel %vm116, %v88, 0
    %v130 = vsel %vm116, %v89, 0
    %v133 = vsel %vm116, %v90, 0
    %v136 = vsel %vm116, %v91, 0
    %v139 = vsel %vm116, %v92, 0
    %141 = vmatprep.subr.mxu0 0.0
    %142 = vmatpush1.msra.mxu0 0.0
    %143 = vmatprep.subr.mxu0 0.0
    %144 = vmatpush1.msra.mxu0 0.0
    %145 = vmatprep.subr.mxu0 0.0
    %146 = vmatpush1.msra.mxu0 0.0
    %147 = vmatprep.subr.mxu0 0.0
    %148 = vmatpush1.msra.mxu0 0.0
    %149 = vmatprep.subr.mxu0 0.0
    %150 = vmatpush1.msra.mxu0 0.0
    %151 = vmatprep.subr.mxu0 0.0
    %152 = vmatpush1.msra.mxu0 0.0
    %153 = vmatprep.subr.mxu0 0.0
    %154 = vmatpush1.msra.mxu0 0.0
    %155 = vmatprep.subr.mxu0 0.0
    %156 = vmatpush1.msra.mxu0 0.0
    %157 = vmatprep.subr.mxu0 0.0
    %158 = vmatpush1.msra.mxu0 0.0
    %159 = vmatprep.subr.mxu0 0.0
    %160 = vmatpush1.msra.mxu0 0.0
    %161 = vmatprep.subr.mxu0 0.0
    %162 = vmatpush1.msra.mxu0 0.0
    %163 = vmatprep.subr.mxu0 0.0
    %164 = vmatpush1.msra.mxu0 0.0
    %165 = vmatprep.subr.mxu0 0.0
    %166 = vmatpush1.msra.mxu0 0.0
    %167 = vmatprep.subr.mxu0 0.0
    %168 = vmatpush1.msra.mxu0 0.0
    %169 = vmatprep.subr.mxu0 %v97
    %170 = vmatpush1.msra.mxu0 %v96
    %171 = vmatprep.subr.mxu0 %v94
    %172 = vmatpush1.msra.mxu0 %v93
    %173 = vmatprep.subr.mxu0 0.0
    %174 = vmatpush2.msra.mxu0 0.0
    %175 = vmatprep.subr.mxu0 0.0
    %176 = vmatpush2.msra.mxu0 0.0
    %177 = vmatprep.subr.mxu0 0.0
    %178 = vmatpush2.msra.mxu0 0.0
    %179 = vmatprep.subr.mxu0 0.0
    %180 = vmatpush2.msra.mxu0 0.0
    %181 = vmatprep.subr.mxu0 0.0
    %182 = vmatpush2.msra.mxu0 0.0
    %183 = vmatprep.subr.mxu0 0.0
    %184 = vmatpush2.msra.mxu0 0.0
    %185 = vmatprep.subr.mxu0 0.0
    %186 = vmatpush2.msra.mxu0 0.0
    %187 = vmatprep.subr.mxu0 0.0
    %188 = vmatpush2.msra.mxu0 0.0
    %189 = vmatprep.subr.mxu0 0.0
    %190 = vmatpush2.msra.mxu0 0.0
    %191 = vmatprep.subr.mxu0 0.0
    %192 = vmatpush2.msra.mxu0 0.0
    %193 = vmatprep.subr.mxu0 0.0
    %194 = vmatpush2.msra.mxu0 0.0
    %195 = vmatprep.subr.mxu0 0.0
    %196 = vmatpush2.msra.mxu0 0.0
    %197 = vmatprep.subr.mxu0 0.0
    %198 = vmatpush2.msra.mxu0 0.0
    %199 = vmatprep.subr.mxu0 0.0
    %200 = vmatpush2.msra.mxu0 0.0
    %201 = vmatprep.subr.mxu0 0.0
    %202 = vmatpush2.msra.mxu0 0.0
    %203 = vmatprep.subr.mxu0 0.0
    %204 = vmatpush2.msra.mxu0 0.0
    %205 = vmatprep.mubr.f32.mxu0 0.0
    %206 = vmatmul.mubr.f32.gmra.mxu0 %v118
    %v207 = vpop.f32.mrf.mxu0
    %v208 = vadd.f32 %v104, %v207
    %v209 = vpop.f32.mrf.mxu0
    %v210 = vadd.f32 %v108, %v209
    %211 = vmatprep.mubr.f32.mxu0 0.0
    %212 = vmatmul.mubr.f32.gmra.mxu0 %v121
    %v213 = vpop.f32.mrf.mxu0
    %v214 = vadd.f32 %v104, %v213
    %v215 = vpop.f32.mrf.mxu0
    %v216 = vadd.f32 %v108, %v215
    %217 = vmatprep.mubr.f32.mxu0 0.0
    %218 = vmatmul.mubr.f32.gmra.mxu0 %v124
    %v219 = vpop.f32.mrf.mxu0
    %v220 = vadd.f32 %v104, %v219
    %v221 = vpop.f32.mrf.mxu0
    %v222 = vadd.f32 %v108, %v221
    %223 = vmatprep.mubr.f32.mxu0 0.0
    %224 = vmatmul.mubr.f32.gmra.mxu0 %v127
    %v225 = vpop.f32.mrf.mxu0
    %v226 = vadd.f32 %v104, %v225
    %v227 = vpop.f32.mrf.mxu0
    %v228 = vadd.f32 %v108, %v227
    %229 = vmatprep.mubr.f32.mxu0 0.0
    %230 = vmatmul.mubr.f32.gmra.mxu0 %v130
    %v231 = vpop.f32.mrf.mxu0
    %v232 = vadd.f32 %v104, %v231
    %v233 = vpop.f32.mrf.mxu0
    %v234 = vadd.f32 %v108, %v233
    %235 = vmatprep.mubr.f32.mxu0 0.0
    %236 = vmatmul.mubr.f32.gmra.mxu0 %v133
    %v237 = vpop.f32.mrf.mxu0
    %v238 = vadd.f32 %v104, %v237
    %v239 = vpop.f32.mrf.mxu0
    %v240 = vadd.f32 %v108, %v239
    %241 = vmatprep.mubr.f32.mxu0 0.0
    %242 = vmatmul.mubr.f32.gmra.mxu0 %v136
    %v243 = vpop.f32.mrf.mxu0
    %v244 = vadd.f32 %v104, %v243
    %v245 = vpop.f32.mrf.mxu0
    %v246 = vadd.f32 %v108, %v245
    %247 = vmatprep.mubr.f32.mxu0 0.0
    %248 = vmatmul.mubr.f32.gmra.mxu0 %v139
    %v249 = vpop.f32.mrf.mxu0
    %v250 = vadd.f32 %v104, %v249
    %v251 = vpop.f32.mrf.mxu0
    %v252 = vadd.f32 %v108, %v251
    %253 = vdwg.mxu0
    %254 = vmatprep.subr.mxu0 0.0
    %255 = vmatpush1.msra.mxu0 0.0
    %256 = vmatprep.subr.mxu0 0.0
    %257 = vmatpush1.msra.mxu0 0.0
    %258 = vmatprep.subr.mxu0 0.0
    %259 = vmatpush1.msra.mxu0 0.0
    %260 = vmatprep.subr.mxu0 0.0
    %261 = vmatpush1.msra.mxu0 0.0
    %262 = vmatprep.subr.mxu0 0.0
    %263 = vmatpush1.msra.mxu0 0.0
    %264 = vmatprep.subr.mxu0 0.0
    %265 = vmatpush1.msra.mxu0 0.0
    %266 = vmatprep.subr.mxu0 0.0
    %267 = vmatpush1.msra.mxu0 0.0
    %268 = vmatprep.subr.mxu0 0.0
    %269 = vmatpush1.msra.mxu0 0.0
    %270 = vmatprep.subr.mxu0 0.0
    %271 = vmatpush1.msra.mxu0 0.0
    %272 = vmatprep.subr.mxu0 0.0
    %273 = vmatpush1.msra.mxu0 0.0
    %274 = vmatprep.subr.mxu0 0.0
    %275 = vmatpush1.msra.mxu0 0.0
    %276 = vmatprep.subr.mxu0 0.0
    %277 = vmatpush1.msra.mxu0 0.0
    %278 = vmatprep.subr.mxu0 0.0
    %279 = vmatpush1.msra.mxu0 0.0
    %280 = vmatprep.subr.mxu0 0.0
    %281 = vmatpush1.msra.mxu0 0.0
    %282 = vmatprep.subr.mxu0 0.0
    %283 = vmatpush1.msra.mxu0 %v98
    %284 = vmatprep.subr.mxu0 0.0
    %285 = vmatpush1.msra.mxu0 %v95
    %286 = vmatprep.subr.mxu0 0.0
    %287 = vmatpush2.msra.mxu0 0.0
    %288 = vmatprep.subr.mxu0 0.0
    %289 = vmatpush2.msra.mxu0 0.0
    %290 = vmatprep.subr.mxu0 0.0
    %291 = vmatpush2.msra.mxu0 0.0
    %292 = vmatprep.subr.mxu0 0.0
    %293 = vmatpush2.msra.mxu0 0.0
    %294 = vmatprep.subr.mxu0 0.0
    %295 = vmatpush2.msra.mxu0 0.0
    %296 = vmatprep.subr.mxu0 0.0
    %297 = vmatpush2.msra.mxu0 0.0
    %298 = vmatprep.subr.mxu0 0.0
    %299 = vmatpush2.msra.mxu0 0.0
    %300 = vmatprep.subr.mxu0 0.0
    %301 = vmatpush2.msra.mxu0 0.0
    %302 = vmatprep.subr.mxu0 0.0
    %303 = vmatpush2.msra.mxu0 0.0
    %304 = vmatprep.subr.mxu0 0.0
    %305 = vmatpush2.msra.mxu0 0.0
    %306 = vmatprep.subr.mxu0 0.0
    %307 = vmatpush2.msra.mxu0 0.0
    %308 = vmatprep.subr.mxu0 0.0
    %309 = vmatpush2.msra.mxu0 0.0
    %310 = vmatprep.subr.mxu0 0.0
    %311 = vmatpush2.msra.mxu0 0.0
    %312 = vmatprep.subr.mxu0 0.0
    %313 = vmatpush2.msra.mxu0 0.0
    %314 = vmatprep.subr.mxu0 0.0
    %315 = vmatpush2.msra.mxu0 0.0
    %316 = vmatprep.subr.mxu0 0.0
    %317 = vmatpush2.msra.mxu0 0.0
    %318 = vmatprep.mubr.f32.mxu0 0.0
    %319 = vmatmul.mubr.f32.gmra.mxu0 %v118
    %v320 = vpop.f32.mrf.mxu0
    %v321 = vadd.f32 %v112, %v320
    %v322 = vpop.f32.mrf.mxu0
    %323 = vmatprep.mubr.f32.mxu0 0.0
    %324 = vmatmul.mubr.f32.gmra.mxu0 %v121
    %v325 = vpop.f32.mrf.mxu0
    %v326 = vadd.f32 %v112, %v325
    %v327 = vpop.f32.mrf.mxu0
    %328 = vmatprep.mubr.f32.mxu0 0.0
    %329 = vmatmul.mubr.f32.gmra.mxu0 %v124
    %v330 = vpop.f32.mrf.mxu0
    %v331 = vadd.f32 %v112, %v330
    %v332 = vpop.f32.mrf.mxu0
    %333 = vmatprep.mubr.f32.mxu0 0.0
    %334 = vmatmul.mubr.f32.gmra.mxu0 %v127
    %v335 = vpop.f32.mrf.mxu0
    %v336 = vadd.f32 %v112, %v335
    %v337 = vpop.f32.mrf.mxu0
    %338 = vmatprep.mubr.f32.mxu0 0.0
    %339 = vmatmul.mubr.f32.gmra.mxu0 %v130
    %v340 = vpop.f32.mrf.mxu0
    %v341 = vadd.f32 %v112, %v340
    %v342 = vpop.f32.mrf.mxu0
    %343 = vmatprep.mubr.f32.mxu0 0.0
    %344 = vmatmul.mubr.f32.gmra.mxu0 %v133
    %v345 = vpop.f32.mrf.mxu0
    %v346 = vadd.f32 %v112, %v345
    %v347 = vpop.f32.mrf.mxu0
    %348 = vmatprep.mubr.f32.mxu0 0.0
    %349 = vmatmul.mubr.f32.gmra.mxu0 %v136
    %v350 = vpop.f32.mrf.mxu0
    %v351 = vadd.f32 %v112, %v350
    %v352 = vpop.f32.mrf.mxu0
    %353 = vmatprep.mubr.f32.mxu0 0.0
    %354 = vmatmul.mubr.f32.gmra.mxu0 %v139
    %v355 = vpop.f32.mrf.mxu0
    %v356 = vadd.f32 %v112, %v355
    %v357 = vpop.f32.mrf.mxu0
    %358 = vdwg.mxu0
    %359 = vst [vmem:[#allocation2] sm:$0xff] %v208
    %360 = vst [vmem:[#allocation2 + $0x8] sm:$0xff] %v210
    %361 = vst [vmem:[#allocation2 + $0x10] sm:$0xff] %v321
    %362 = vst [vmem:[#allocation2 + $0x18] sm:$0xff] %v214
    %363 = vst [vmem:[#allocation2 + $0x20] sm:$0xff] %v216
    %364 = vst [vmem:[#allocation2 + $0x28] sm:$0xff] %v326
    %365 = vst [vmem:[#allocation2 + $0x30] sm:$0xff] %v220
    %366 = vst [vmem:[#allocation2 + $0x38] sm:$0xff] %v222
    %367 = vst [vmem:[#allocation2 + $0x40] sm:$0xff] %v331
    %368 = vst [vmem:[#allocation2 + $0x48] sm:$0xff] %v226
    %369 = vst [vmem:[#allocation2 + $0x50] sm:$0xff] %v228
    %370 = vst [vmem:[#allocation2 + $0x58] sm:$0xff] %v336
    %371 = vst [vmem:[#allocation2 + $0x60] sm:$0xff] %v232
    %372 = vst [vmem:[#allocation2 + $0x68] sm:$0xff] %v234
    %373 = vst [vmem:[#allocation2 + $0x70] sm:$0xff] %v341
    %374 = vst [vmem:[#allocation2 + $0x78] sm:$0xff] %v238
    %375 = vst [vmem:[#allocation2 + $0x80] sm:$0xff] %v240
    %376 = vst [vmem:[#allocation2 + $0x88] sm:$0xff] %v346
    %377 = vst [vmem:[#allocation2 + $0x90] sm:$0xff] %v244
    %378 = vst [vmem:[#allocation2 + $0x98] sm:$0xff] %v246
    %379 = vst [vmem:[#allocation2 + $0xa0] sm:$0xff] %v351
    %380 = vst [vmem:[#allocation2 + $0xa8] sm:$0xff] %v250
    %381 = vst [vmem:[#allocation2 + $0xb0] sm:$0xff] %v252
    %382 = vst [vmem:[#allocation2 + $0xb8] sm:$0xff] %v356
    %v383 = vld [vmem:[#allocation8] sm:$0xff]
    %v384 = vld [vmem:[#allocation8 + $0x8] sm:$0xff]
    %v385 = vld [vmem:[#allocation8 + $0x10] sm:$0xff]
    %v386 = vld [vmem:[#allocation8 + $0x18] sm:$0xff]
    %v387 = vld [vmem:[#allocation8 + $0x20] sm:$0xff]
    %v388 = vld [vmem:[#allocation8 + $0x28] sm:$0xff]
    %v389 = vld [vmem:[#allocation8 + $0x30] sm:$0xff]
    %v390 = vld [vmem:[#allocation8 + $0x38] sm:$0xff]
    %v391 = vld [vmem:[#allocation8 + $0x40] sm:$0xff]
    %v392 = vld [vmem:[#allocation8 + $0x48] sm:$0xff]
    %v393 = vld [vmem:[#allocation8 + $0x50] sm:$0xff]
    %v394 = vld [vmem:[#allocation8 + $0x58] sm:$0xff]
    %v395 = vld [vmem:[#allocation8 + $0x60] sm:$0xff]
    %v396 = vld [vmem:[#allocation8 + $0x68] sm:$0xff]
    %v397 = vld [vmem:[#allocation8 + $0x70] sm:$0xff]
    %v398 = vld [vmem:[#allocation8 + $0x78] sm:$0xff]
    %v399 = vld [vmem:[#allocation8 + $0x80] sm:$0xff]
    %v400 = vld [vmem:[#allocation8 + $0x88] sm:$0xff]
    %v401 = vld [vmem:[#allocation8 + $0x90] sm:$0xff]
    %v402 = vld [vmem:[#allocation8 + $0x98] sm:$0xff]
    %v403 = vld [vmem:[#allocation8 + $0xa0] sm:$0xff]
    %v404 = vld [vmem:[#allocation8 + $0xa8] sm:$0xff]
    %v405 = vld [vmem:[#allocation8 + $0xb0] sm:$0xff]
    %v406 = vld [vmem:[#allocation8 + $0xb8] sm:$0xff]
    %v407 = vld [vmem:[#allocation8 + $0xc0] sm:$0xff]
    %v408 = vld [vmem:[#allocation8 + $0xc8] sm:$0xff]
    %v409 = vld [vmem:[#allocation8 + $0xd0] sm:$0xff]
    %v410 = vld [vmem:[#allocation8 + $0xd8] sm:$0xff]
    %v411 = vld [vmem:[#allocation8 + $0xe0] sm:$0xff]
    %v412 = vld [vmem:[#allocation8 + $0xe8] sm:$0xff]
    %v413 = vld [vmem:[#allocation8 + $0xf0] sm:$0xff]
    %v414 = vld [vmem:[#allocation8 + $0xf8] sm:$0xff]
    %v415 = vld [vmem:[#allocation8 + $0x100] sm:$0xff]
    %v416 = vld [vmem:[#allocation8 + $0x108] sm:$0xff]
    %v417 = vld [vmem:[#allocation8 + $0x110] sm:$0xff]
    %v418 = vld [vmem:[#allocation8 + $0x118] sm:$0xff]
    %v419 = vld [vmem:[#allocation8 + $0x120] sm:$0xff]
    %v420 = vld [vmem:[#allocation8 + $0x128] sm:$0xff]
    %v421 = vld [vmem:[#allocation8 + $0x130] sm:$0xff]
    %v422 = vld [vmem:[#allocation8 + $0x138] sm:$0xff]
    %v423 = vld [vmem:[#allocation8 + $0x140] sm:$0xff]
    %v424 = vld [vmem:[#allocation8 + $0x148] sm:$0xff]
    %v425 = vld [vmem:[#allocation8 + $0x150] sm:$0xff]
    %v426 = vld [vmem:[#allocation8 + $0x158] sm:$0xff]
    %v427 = vld [vmem:[#allocation8 + $0x160] sm:$0xff]
    %v428 = vld [vmem:[#allocation8 + $0x168] sm:$0xff]
    %v429 = vld [vmem:[#allocation8 + $0x170] sm:$0xff]
    %v430 = vld [vmem:[#allocation8 + $0x178] sm:$0xff]
    %v431 = vld [vmem:[%s5] sm:$0x7]
    %v433 = vlaneseq
    %v434 = vshrl.u32 %v433, 7
    %v435 = vsub.s32 0, %v434
    %v436 = vrot.slane %v431, %v435
    %v437 = vlaneseq
    %v438 = vshrl.u32 %v437, 7
    %v439 = vsub.s32 1, %v438
    %v440 = vrot.slane %v431, %v439
    %v441 = vlaneseq
    %v442 = vshrl.u32 %v441, 7
    %v443 = vsub.s32 2, %v442
    %v444 = vrot.slane %v431, %v443
    %v448 = vld [vmem:[%s0] sm:$0xff]
    %v449 = vsub.s32 %v448, 1
    %v450 = vld [vmem:[#allocation2] sm:$0xff]
    %v451 = vld [vmem:[#allocation2 + $0x8] sm:$0xff]
    %v452 = vld [vmem:[#allocation2 + $0x10] sm:$0xff]
    %453 = vmatprep.subr.mxu0 %v429
    %454 = vmatpush1.msra.mxu0 %v428
    %455 = vmatprep.subr.mxu0 %v426
    %456 = vmatpush1.msra.mxu0 %v425
    %457 = vmatprep.subr.mxu0 %v423
    %458 = vmatpush1.msra.mxu0 %v422
    %459 = vmatprep.subr.mxu0 %v420
    %460 = vmatpush1.msra.mxu0 %v419
    %461 = vmatprep.subr.mxu0 %v417
    %462 = vmatpush1.msra.mxu0 %v416
    %463 = vmatprep.subr.mxu0 %v414
    %464 = vmatpush1.msra.mxu0 %v413
    %465 = vmatprep.subr.mxu0 %v411
    %466 = vmatpush1.msra.mxu0 %v410
    %467 = vmatprep.subr.mxu0 %v408
    %468 = vmatpush1.msra.mxu0 %v407
    %469 = vmatprep.subr.mxu0 %v405
    %470 = vmatpush1.msra.mxu0 %v404
    %471 = vmatprep.subr.mxu0 %v402
    %472 = vmatpush1.msra.mxu0 %v401
    %473 = vmatprep.subr.mxu0 %v399
    %474 = vmatpush1.msra.mxu0 %v398
    %475 = vmatprep.subr.mxu0 %v396
    %476 = vmatpush1.msra.mxu0 %v395
    %477 = vmatprep.subr.mxu0 %v393
    %478 = vmatpush1.msra.mxu0 %v392
    %479 = vmatprep.subr.mxu0 %v390
    %480 = vmatpush1.msra.mxu0 %v389
    %481 = vmatprep.subr.mxu0 %v387
    %482 = vmatpush1.msra.mxu0 %v386
    %483 = vmatprep.subr.mxu0 %v384
    %484 = vmatpush1.msra.mxu0 %v383
    %485 = vmatprep.subr.mxu0 0.0
    %486 = vmatpush2.msra.mxu0 0.0
    %487 = vmatprep.subr.mxu0 0.0
    %488 = vmatpush2.msra.mxu0 0.0
    %489 = vmatprep.subr.mxu0 0.0
    %490 = vmatpush2.msra.mxu0 0.0
    %491 = vmatprep.subr.mxu0 0.0
    %492 = vmatpush2.msra.mxu0 0.0
    %493 = vmatprep.subr.mxu0 0.0
    %494 = vmatpush2.msra.mxu0 0.0
    %495 = vmatprep.subr.mxu0 0.0
    %496 = vmatpush2.msra.mxu0 0.0
    %497 = vmatprep.subr.mxu0 0.0
    %498 = vmatpush2.msra.mxu0 0.0
    %499 = vmatprep.subr.mxu0 0.0
    %500 = vmatpush2.msra.mxu0 0.0
    %501 = vmatprep.subr.mxu0 0.0
    %502 = vmatpush2.msra.mxu0 0.0
    %503 = vmatprep.subr.mxu0 0.0
    %504 = vmatpush2.msra.mxu0 0.0
    %505 = vmatprep.subr.mxu0 0.0
    %506 = vmatpush2.msra.mxu0 0.0
    %507 = vmatprep.subr.mxu0 0.0
    %508 = vmatpush2.msra.mxu0 0.0
    %509 = vmatprep.subr.mxu0 0.0
    %510 = vmatpush2.msra.mxu0 0.0
    %511 = vmatprep.subr.mxu0 0.0
    %512 = vmatpush2.msra.mxu0 0.0
    %513 = vmatprep.subr.mxu0 0.0
    %514 = vmatpush2.msra.mxu0 0.0
    %515 = vmatprep.subr.mxu0 0.0
    %516 = vmatpush2.msra.mxu0 0.0
    %517 = vmatprep.mubr.f32.mxu0 0.0
    %518 = vmatmul.mubr.f32.gmra.mxu0 0.0
    %v519 = vpop.f32.mrf.mxu0
    %v520 = vadd.f32 %v436, %v519
    %v521 = vpop.f32.mrf.mxu0
    %v522 = vadd.f32 %v440, %v521
    %523 = vdwg.mxu0
    %524 = vmatprep.subr.mxu0 0.0
    %525 = vmatpush1.msra.mxu0 %v430
    %526 = vmatprep.subr.mxu0 0.0
    %527 = vmatpush1.msra.mxu0 %v427
    %528 = vmatprep.subr.mxu0 0.0
    %529 = vmatpush1.msra.mxu0 %v424
    %530 = vmatprep.subr.mxu0 0.0
    %531 = vmatpush1.msra.mxu0 %v421
    %532 = vmatprep.subr.mxu0 0.0
    %533 = vmatpush1.msra.mxu0 %v418
    %534 = vmatprep.subr.mxu0 0.0
    %535 = vmatpush1.msra.mxu0 %v415
    %536 = vmatprep.subr.mxu0 0.0
    %537 = vmatpush1.msra.mxu0 %v412
    %538 = vmatprep.subr.mxu0 0.0
    %539 = vmatpush1.msra.mxu0 %v409
    %540 = vmatprep.subr.mxu0 0.0
    %541 = vmatpush1.msra.mxu0 %v406
    %542 = vmatprep.subr.mxu0 0.0
    %543 = vmatpush1.msra.mxu0 %v403
    %544 = vmatprep.subr.mxu0 0.0
    %545 = vmatpush1.msra.mxu0 %v400
    %546 = vmatprep.subr.mxu0 0.0
    %547 = vmatpush1.msra.mxu0 %v397
    %548 = vmatprep.subr.mxu0 0.0
    %549 = vmatpush1.msra.mxu0 %v394
    %550 = vmatprep.subr.mxu0 0.0
    %551 = vmatpush1.msra.mxu0 %v391
    %552 = vmatprep.subr.mxu0 0.0
    %553 = vmatpush1.msra.mxu0 %v388
    %554 = vmatprep.subr.mxu0 0.0
    %555 = vmatpush1.msra.mxu0 %v385
    %556 = vmatprep.subr.mxu0 0.0
    %557 = vmatpush2.msra.mxu0 0.0
    %558 = vmatprep.subr.mxu0 0.0
    %559 = vmatpush2.msra.mxu0 0.0
    %560 = vmatprep.subr.mxu0 0.0
    %561 = vmatpush2.msra.mxu0 0.0
    %562 = vmatprep.subr.mxu0 0.0
    %563 = vmatpush2.msra.mxu0 0.0
    %564 = vmatprep.subr.mxu0 0.0
    %565 = vmatpush2.msra.mxu0 0.0
    %566 = vmatprep.subr.mxu0 0.0
    %567 = vmatpush2.msra.mxu0 0.0
    %568 = vmatprep.subr.mxu0 0.0
    %569 = vmatpush2.msra.mxu0 0.0
    %570 = vmatprep.subr.mxu0 0.0
    %571 = vmatpush2.msra.mxu0 0.0
    %572 = vmatprep.subr.mxu0 0.0
    %573 = vmatpush2.msra.mxu0 0.0
    %574 = vmatprep.subr.mxu0 0.0
    %575 = vmatpush2.msra.mxu0 0.0
    %576 = vmatprep.subr.mxu0 0.0
    %577 = vmatpush2.msra.mxu0 0.0
    %578 = vmatprep.subr.mxu0 0.0
    %579 = vmatpush2.msra.mxu0 0.0
    %580 = vmatprep.subr.mxu0 0.0
    %581 = vmatpush2.msra.mxu0 0.0
    %582 = vmatprep.subr.mxu0 0.0
    %583 = vmatpush2.msra.mxu0 0.0
    %584 = vmatprep.subr.mxu0 0.0
    %585 = vmatpush2.msra.mxu0 0.0
    %586 = vmatprep.subr.mxu0 0.0
    %587 = vmatpush2.msra.mxu0 0.0
    %588 = vmatprep.mubr.f32.mxu0 0.0
    %589 = vmatmul.mubr.f32.gmra.mxu0 0.0
    %v590 = vpop.f32.mrf.mxu0
    %v591 = vadd.f32 %v444, %v590
    %v592 = vpop.f32.mrf.mxu0
    %593 = vdwg.mxu0
    %v594 = vadd.f32 %v450, %v520
    %v595 = vxor.u32 %v594, 2147483648
    %v596 = vmul.f32 %v595, 1.442695
    %v597 = vpow.pop %v596
    %v598 = vadd.f32 %v597, 1.0
    %v599 = vrcp.pop %v598
    %v600 = vmul.f32 1.0, %v599
    %v601 = vadd.f32 %v451, %v522
    %v602 = vxor.u32 %v601, 2147483648
    %v603 = vmul.f32 %v602, 1.442695
    %v604 = vpow.pop %v603
    %v605 = vadd.f32 %v604, 1.0
    %v606 = vrcp.pop %v605
    %v607 = vmul.f32 1.0, %v606
    %v608 = vmul.f32 %v600, %v591
    %v609 = vadd.f32 %v452, %v608
    %v610 = vtanh.pop %v609
    %v611 = vsub.f32 1.0, %v607
    %v612 = vmul.f32 %v611, %v610
    %v613 = vmul.f32 %v607, 0.0
    %v614 = vadd.f32 %v612, %v613
    %vm615 = vcmp.eq.s32.totalorder %v449, 0
    %v616 = vsel %vm615, 1, 0
    %617 = vset.pattern.permute.xlu0 0
    %618 = vperm.xlu0 %617, %v616
    %v619 = vpop.permute.xlu0 %618
    %vm620 = vcmp.eq.s32.totalorder %v619, 1
    %v621 = vsel %vm620, %v614, 0.0
    %s622 = scalar_lea.vmem [#allocation2], 24
    %v623 = vld [vmem:[%s622] sm:$0xff]
    %v624 = vld [vmem:[%s622 + $0x8] sm:$0xff]
    %v625 = vld [vmem:[%s622 + $0x10] sm:$0xff]
    %626 = vmatprep.subr.mxu0 %v429
    %627 = vmatpush1.msra.mxu0 %v428
    %628 = vmatprep.subr.mxu0 %v426
    %629 = vmatpush1.msra.mxu0 %v425
    %630 = vmatprep.subr.mxu0 %v423
    %631 = vmatpush1.msra.mxu0 %v422
    %632 = vmatprep.subr.mxu0 %v420
    %633 = vmatpush1.msra.mxu0 %v419
    %634 = vmatprep.subr.mxu0 %v417
    %635 = vmatpush1.msra.mxu0 %v416
    %636 = vmatprep.subr.mxu0 %v414
    %637 = vmatpush1.msra.mxu0 %v413
    %638 = vmatprep.subr.mxu0 %v411
    %639 = vmatpush1.msra.mxu0 %v410
    %640 = vmatprep.subr.mxu0 %v408
    %641 = vmatpush1.msra.mxu0 %v407
    %642 = vmatprep.subr.mxu0 %v405
    %643 = vmatpush1.msra.mxu0 %v404
    %644 = vmatprep.subr.mxu0 %v402
    %645 = vmatpush1.msra.mxu0 %v401
    %646 = vmatprep.subr.mxu0 %v399
    %647 = vmatpush1.msra.mxu0 %v398
    %648 = vmatprep.subr.mxu0 %v396
    %649 = vmatpush1.msra.mxu0 %v395
    %650 = vmatprep.subr.mxu0 %v393
    %651 = vmatpush1.msra.mxu0 %v392
    %652 = vmatprep.subr.mxu0 %v390
    %653 = vmatpush1.msra.mxu0 %v389
    %654 = vmatprep.subr.mxu0 %v387
    %655 = vmatpush1.msra.mxu0 %v386
    %656 = vmatprep.subr.mxu0 %v384
    %657 = vmatpush1.msra.mxu0 %v383
    %658 = vmatprep.subr.mxu0 0.0
    %659 = vmatpush2.msra.mxu0 0.0
    %660 = vmatprep.subr.mxu0 0.0
    %661 = vmatpush2.msra.mxu0 0.0
    %662 = vmatprep.subr.mxu0 0.0
    %663 = vmatpush2.msra.mxu0 0.0
    %664 = vmatprep.subr.mxu0 0.0
    %665 = vmatpush2.msra.mxu0 0.0
    %666 = vmatprep.subr.mxu0 0.0
    %667 = vmatpush2.msra.mxu0 0.0
    %668 = vmatprep.subr.mxu0 0.0
    %669 = vmatpush2.msra.mxu0 0.0
    %670 = vmatprep.subr.mxu0 0.0
    %671 = vmatpush2.msra.mxu0 0.0
    %672 = vmatprep.subr.mxu0 0.0
    %673 = vmatpush2.msra.mxu0 0.0
    %674 = vmatprep.subr.mxu0 0.0
    %675 = vmatpush2.msra.mxu0 0.0
    %676 = vmatprep.subr.mxu0 0.0
    %677 = vmatpush2.msra.mxu0 0.0
    %678 = vmatprep.subr.mxu0 0.0
    %679 = vmatpush2.msra.mxu0 0.0
    %680 = vmatprep.subr.mxu0 0.0
    %681 = vmatpush2.msra.mxu0 0.0
    %682 = vmatprep.subr.mxu0 0.0
    %683 = vmatpush2.msra.mxu0 0.0
    %684 = vmatprep.subr.mxu0 0.0
    %685 = vmatpush2.msra.mxu0 0.0
    %686 = vmatprep.subr.mxu0 0.0
    %687 = vmatpush2.msra.mxu0 0.0
    %688 = vmatprep.subr.mxu0 0.0
    %689 = vmatpush2.msra.mxu0 0.0
    %690 = vmatprep.mubr.f32.mxu0 0.0
    %691 = vmatmul.mubr.f32.gmra.mxu0 %v614
    %v692 = vpop.f32.mrf.mxu0
    %v693 = vadd.f32 %v436, %v692
    %v694 = vpop.f32.mrf.mxu0
    %v695 = vadd.f32 %v440, %v694
    %696 = vdwg.mxu0
    %697 = vmatprep.subr.mxu0 0.0
    %698 = vmatpush1.msra.mxu0 %v430
    %699 = vmatprep.subr.mxu0 0.0
    %700 = vmatpush1.msra.mxu0 %v427
    %701 = vmatprep.subr.mxu0 0.0
    %702 = vmatpush1.msra.mxu0 %v424
    %703 = vmatprep.subr.mxu0 0.0
    %704 = vmatpush1.msra.mxu0 %v421
    %705 = vmatprep.subr.mxu0 0.0
    %706 = vmatpush1.msra.mxu0 %v418
    %707 = vmatprep.subr.mxu0 0.0
    %708 = vmatpush1.msra.mxu0 %v415
    %709 = vmatprep.subr.mxu0 0.0
    %710 = vmatpush1.msra.mxu0 %v412
    %711 = vmatprep.subr.mxu0 0.0
    %712 = vmatpush1.msra.mxu0 %v409
    %713 = vmatprep.subr.mxu0 0.0
    %714 = vmatpush1.msra.mxu0 %v406
    %715 = vmatprep.subr.mxu0 0.0
    %716 = vmatpush1.msra.mxu0 %v403
    %717 = vmatprep.subr.mxu0 0.0
    %718 = vmatpush1.msra.mxu0 %v400
    %719 = vmatprep.subr.mxu0 0.0
    %720 = vmatpush1.msra.mxu0 %v397
    %721 = vmatprep.subr.mxu0 0.0
    %722 = vmatpush1.msra.mxu0 %v394
    %723 = vmatprep.subr.mxu0 0.0
    %724 = vmatpush1.msra.mxu0 %v391
    %725 = vmatprep.subr.mxu0 0.0
    %726 = vmatpush1.msra.mxu0 %v388
    %727 = vmatprep.subr.mxu0 0.0
    %728 = vmatpush1.msra.mxu0 %v385
    %729 = vmatprep.subr.mxu0 0.0
    %730 = vmatpush2.msra.mxu0 0.0
    %731 = vmatprep.subr.mxu0 0.0
    %732 = vmatpush2.msra.mxu0 0.0
    %733 = vmatprep.subr.mxu0 0.0
    %734 = vmatpush2.msra.mxu0 0.0
    %735 = vmatprep.subr.mxu0 0.0
    %736 = vmatpush2.msra.mxu0 0.0
    %737 = vmatprep.subr.mxu0 0.0
    %738 = vmatpush2.msra.mxu0 0.0
    %739 = vmatprep.subr.mxu0 0.0
    %740 = vmatpush2.msra.mxu0 0.0
    %741 = vmatprep.subr.mxu0 0.0
    %742 = vmatpush2.msra.mxu0 0.0
    %743 = vmatprep.subr.mxu0 0.0
    %744 = vmatpush2.msra.mxu0 0.0
    %745 = vmatprep.subr.mxu0 0.0
    %746 = vmatpush2.msra.mxu0 0.0
    %747 = vmatprep.subr.mxu0 0.0
    %748 = vmatpush2.msra.mxu0 0.0
    %749 = vmatprep.subr.mxu0 0.0
    %750 = vmatpush2.msra.mxu0 0.0
    %751 = vmatprep.subr.mxu0 0.0
    %752 = vmatpush2.msra.mxu0 0.0
    %753 = vmatprep.subr.mxu0 0.0
    %754 = vmatpush2.msra.mxu0 0.0
    %755 = vmatprep.subr.mxu0 0.0
    %756 = vmatpush2.msra.mxu0 0.0
    %757 = vmatprep.subr.mxu0 0.0
    %758 = vmatpush2.msra.mxu0 0.0
    %759 = vmatprep.subr.mxu0 0.0
    %760 = vmatpush2.msra.mxu0 0.0
    %761 = vmatprep.mubr.f32.mxu0 0.0
    %762 = vmatmul.mubr.f32.gmra.mxu0 %v614
    %v763 = vpop.f32.mrf.mxu0
    %v764 = vadd.f32 %v444, %v763
    %v765 = vpop.f32.mrf.mxu0
    %766 = vdwg.mxu0
    %v767 = vadd.f32 %v623, %v693
    %v768 = vxor.u32 %v767, 2147483648
    %v769 = vmul.f32 %v768, 1.442695
    %v770 = vpow.pop %v769
    %v771 = vadd.f32 %v770, 1.0
    %v772 = vrcp.pop %v771
    %v773 = vmul.f32 1.0, %v772
    %v774 = vadd.f32 %v624, %v695
    %v775 = vxor.u32 %v774, 2147483648
    %v776 = vmul.f32 %v775, 1.442695
    %v777 = vpow.pop %v776
    %v778 = vadd.f32 %v777, 1.0
    %v779 = vrcp.pop %v778
    %v780 = vmul.f32 1.0, %v779
    %v781 = vmul.f32 %v773, %v764
    %v782 = vadd.f32 %v625, %v781
    %v783 = vtanh.pop %v782
    %v784 = vsub.f32 1.0, %v780
    %v785 = vmul.f32 %v784, %v783
    %v786 = vmul.f32 %v780, %v614
    %v787 = vadd.f32 %v785, %v786
    %vm788 = vcmp.eq.s32.totalorder %v449, 1
    %v789 = vsel %vm788, 1, 0
    %790 = vset.pattern.permute.xlu0 0
    %791 = vperm.xlu0 %790, %v789
    %v792 = vpop.permute.xlu0 %791
    %vm793 = vcmp.eq.s32.totalorder %v792, 1
    %v794 = vsel %vm793, %v787, %v621
    %s795 = scalar_lea.vmem [#allocation2], 48
    %v796 = vld [vmem:[%s795] sm:$0xff]
    %v797 = vld [vmem:[%s795 + $0x8] sm:$0xff]
    %v798 = vld [vmem:[%s795 + $0x10] sm:$0xff]
    %799 = vmatprep.subr.mxu0 %v429
    %800 = vmatpush1.msra.mxu0 %v428
    %801 = vmatprep.subr.mxu0 %v426
    %802 = vmatpush1.msra.mxu0 %v425
    %803 = vmatprep.subr.mxu0 %v423
    %804 = vmatpush1.msra.mxu0 %v422
    %805 = vmatprep.subr.mxu0 %v420
    %806 = vmatpush1.msra.mxu0 %v419
    %807 = vmatprep.subr.mxu0 %v417
    %808 = vmatpush1.msra.mxu0 %v416
    %809 = vmatprep.subr.mxu0 %v414
    %810 = vmatpush1.msra.mxu0 %v413
    %811 = vmatprep.subr.mxu0 %v411
    %812 = vmatpush1.msra.mxu0 %v410
    %813 = vmatprep.subr.mxu0 %v408
    %814 = vmatpush1.msra.mxu0 %v407
    %815 = vmatprep.subr.mxu0 %v405
    %816 = vmatpush1.msra.mxu0 %v404
    %817 = vmatprep.subr.mxu0 %v402
    %818 = vmatpush1.msra.mxu0 %v401
    %819 = vmatprep.subr.mxu0 %v399
    %820 = vmatpush1.msra.mxu0 %v398
    %821 = vmatprep.subr.mxu0 %v396
    %822 = vmatpush1.msra.mxu0 %v395
    %823 = vmatprep.subr.mxu0 %v393
    %824 = vmatpush1.msra.mxu0 %v392
    %825 = vmatprep.subr.mxu0 %v390
    %826 = vmatpush1.msra.mxu0 %v389
    %827 = vmatprep.subr.mxu0 %v387
    %828 = vmatpush1.msra.mxu0 %v386
    %829 = vmatprep.subr.mxu0 %v384
    %830 = vmatpush1.msra.mxu0 %v383
    %831 = vmatprep.subr.mxu0 0.0
    %832 = vmatpush2.msra.mxu0 0.0
    %833 = vmatprep.subr.mxu0 0.0
    %834 = vmatpush2.msra.mxu0 0.0
    %835 = vmatprep.subr.mxu0 0.0
    %836 = vmatpush2.msra.mxu0 0.0
    %837 = vmatprep.subr.mxu0 0.0
    %838 = vmatpush2.msra.mxu0 0.0
    %839 = vmatprep.subr.mxu0 0.0
    %840 = vmatpush2.msra.mxu0 0.0
    %841 = vmatprep.subr.mxu0 0.0
    %842 = vmatpush2.msra.mxu0 0.0
    %843 = vmatprep.subr.mxu0 0.0
    %844 = vmatpush2.msra.mxu0 0.0
    %845 = vmatprep.subr.mxu0 0.0
    %846 = vmatpush2.msra.mxu0 0.0
    %847 = vmatprep.subr.mxu0 0.0
    %848 = vmatpush2.msra.mxu0 0.0
    %849 = vmatprep.subr.mxu0 0.0
    %850 = vmatpush2.msra.mxu0 0.0
    %851 = vmatprep.subr.mxu0 0.0
    %852 = vmatpush2.msra.mxu0 0.0
    %853 = vmatprep.subr.mxu0 0.0
    %854 = vmatpush2.msra.mxu0 0.0
    %855 = vmatprep.subr.mxu0 0.0
    %856 = vmatpush2.msra.mxu0 0.0
    %857 = vmatprep.subr.mxu0 0.0
    %858 = vmatpush2.msra.mxu0 0.0
    %859 = vmatprep.subr.mxu0 0.0
    %860 = vmatpush2.msra.mxu0 0.0
    %861 = vmatprep.subr.mxu0 0.0
    %862 = vmatpush2.msra.mxu0 0.0
    %863 = vmatprep.mubr.f32.mxu0 0.0
    %864 = vmatmul.mubr.f32.gmra.mxu0 %v787
    %v865 = vpop.f32.mrf.mxu0
    %v866 = vadd.f32 %v436, %v865
    %v867 = vpop.f32.mrf.mxu0
    %v868 = vadd.f32 %v440, %v867
    %869 = vdwg.mxu0
    %870 = vmatprep.subr.mxu0 0.0
    %871 = vmatpush1.msra.mxu0 %v430
    %872 = vmatprep.subr.mxu0 0.0
    %873 = vmatpush1.msra.mxu0 %v427
    %874 = vmatprep.subr.mxu0 0.0
    %875 = vmatpush1.msra.mxu0 %v424
    %876 = vmatprep.subr.mxu0 0.0
    %877 = vmatpush1.msra.mxu0 %v421
    %878 = vmatprep.subr.mxu0 0.0
    %879 = vmatpush1.msra.mxu0 %v418
    %880 = vmatprep.subr.mxu0 0.0
    %881 = vmatpush1.msra.mxu0 %v415
    %882 = vmatprep.subr.mxu0 0.0
    %883 = vmatpush1.msra.mxu0 %v412
    %884 = vmatprep.subr.mxu0 0.0
    %885 = vmatpush1.msra.mxu0 %v409
    %886 = vmatprep.subr.mxu0 0.0
    %887 = vmatpush1.msra.mxu0 %v406
    %888 = vmatprep.subr.mxu0 0.0
    %889 = vmatpush1.msra.mxu0 %v403
    %890 = vmatprep.subr.mxu0 0.0
    %891 = vmatpush1.msra.mxu0 %v400
    %892 = vmatprep.subr.mxu0 0.0
    %893 = vmatpush1.msra.mxu0 %v397
    %894 = vmatprep.subr.mxu0 0.0
    %895 = vmatpush1.msra.mxu0 %v394
    %896 = vmatprep.subr.mxu0 0.0
    %897 = vmatpush1.msra.mxu0 %v391
    %898 = vmatprep.subr.mxu0 0.0
    %899 = vmatpush1.msra.mxu0 %v388
    %900 = vmatprep.subr.mxu0 0.0
    %901 = vmatpush1.msra.mxu0 %v385
    %902 = vmatprep.subr.mxu0 0.0
    %903 = vmatpush2.msra.mxu0 0.0
    %904 = vmatprep.subr.mxu0 0.0
    %905 = vmatpush2.msra.mxu0 0.0
    %906 = vmatprep.subr.mxu0 0.0
    %907 = vmatpush2.msra.mxu0 0.0
    %908 = vmatprep.subr.mxu0 0.0
    %909 = vmatpush2.msra.mxu0 0.0
    %910 = vmatprep.subr.mxu0 0.0
    %911 = vmatpush2.msra.mxu0 0.0
    %912 = vmatprep.subr.mxu0 0.0
    %913 = vmatpush2.msra.mxu0 0.0
    %914 = vmatprep.subr.mxu0 0.0
    %915 = vmatpush2.msra.mxu0 0.0
    %916 = vmatprep.subr.mxu0 0.0
    %917 = vmatpush2.msra.mxu0 0.0
    %918 = vmatprep.subr.mxu0 0.0
    %919 = vmatpush2.msra.mxu0 0.0
    %920 = vmatprep.subr.mxu0 0.0
    %921 = vmatpush2.msra.mxu0 0.0
    %922 = vmatprep.subr.mxu0 0.0
    %923 = vmatpush2.msra.mxu0 0.0
    %924 = vmatprep.subr.mxu0 0.0
    %925 = vmatpush2.msra.mxu0 0.0
    %926 = vmatprep.subr.mxu0 0.0
    %927 = vmatpush2.msra.mxu0 0.0
    %928 = vmatprep.subr.mxu0 0.0
    %929 = vmatpush2.msra.mxu0 0.0
    %930 = vmatprep.subr.mxu0 0.0
    %931 = vmatpush2.msra.mxu0 0.0
    %932 = vmatprep.subr.mxu0 0.0
    %933 = vmatpush2.msra.mxu0 0.0
    %934 = vmatprep.mubr.f32.mxu0 0.0
    %935 = vmatmul.mubr.f32.gmra.mxu0 %v787
    %v936 = vpop.f32.mrf.mxu0
    %v937 = vadd.f32 %v444, %v936
    %v938 = vpop.f32.mrf.mxu0
    %939 = vdwg.mxu0
    %v940 = vadd.f32 %v796, %v866
    %v941 = vxor.u32 %v940, 2147483648
    %v942 = vmul.f32 %v941, 1.442695
    %v943 = vpow.pop %v942
    %v944 = vadd.f32 %v943, 1.0
    %v945 = vrcp.pop %v944
    %v946 = vmul.f32 1.0, %v945
    %v947 = vadd.f32 %v797, %v868
    %v948 = vxor.u32 %v947, 2147483648
    %v949 = vmul.f32 %v948, 1.442695
    %v950 = vpow.pop %v949
    %v951 = vadd.f32 %v950, 1.0
    %v952 = vrcp.pop %v951
    %v953 = vmul.f32 1.0, %v952
    %v954 = vmul.f32 %v946, %v937
    %v955 = vadd.f32 %v798, %v954
    %v956 = vtanh.pop %v955
    %v957 = vsub.f32 1.0, %v953
    %v958 = vmul.f32 %v957, %v956
    %v959 = vmul.f32 %v953, %v787
    %v960 = vadd.f32 %v958, %v959
    %vm961 = vcmp.eq.s32.totalorder %v449, 2
    %v962 = vsel %vm961, 1, 0
    %963 = vset.pattern.permute.xlu0 0
    %964 = vperm.xlu0 %963, %v962
    %v965 = vpop.permute.xlu0 %964
    %vm966 = vcmp.eq.s32.totalorder %v965, 1
    %v967 = vsel %vm966, %v960, %v794
    %s968 = scalar_lea.vmem [#allocation2], 72
    %v969 = vld [vmem:[%s968] sm:$0xff]
    %v970 = vld [vmem:[%s968 + $0x8] sm:$0xff]
    %v971 = vld [vmem:[%s968 + $0x10] sm:$0xff]
    %972 = vmatprep.subr.mxu0 %v429
    %973 = vmatpush1.msra.mxu0 %v428
    %974 = vmatprep.subr.mxu0 %v426
    %975 = vmatpush1.msra.mxu0 %v425
    %976 = vmatprep.subr.mxu0 %v423
    %977 = vmatpush1.msra.mxu0 %v422
    %978 = vmatprep.subr.mxu0 %v420
    %979 = vmatpush1.msra.mxu0 %v419
    %980 = vmatprep.subr.mxu0 %v417
    %981 = vmatpush1.msra.mxu0 %v416
    %982 = vmatprep.subr.mxu0 %v414
    %983 = vmatpush1.msra.mxu0 %v413
    %984 = vmatprep.subr.mxu0 %v411
    %985 = vmatpush1.msra.mxu0 %v410
    %986 = vmatprep.subr.mxu0 %v408
    %987 = vmatpush1.msra.mxu0 %v407
    %988 = vmatprep.subr.mxu0 %v405
    %989 = vmatpush1.msra.mxu0 %v404
    %990 = vmatprep.subr.mxu0 %v402
    %991 = vmatpush1.msra.mxu0 %v401
    %992 = vmatprep.subr.mxu0 %v399
    %993 = vmatpush1.msra.mxu0 %v398
    %994 = vmatprep.subr.mxu0 %v396
    %995 = vmatpush1.msra.mxu0 %v395
    %996 = vmatprep.subr.mxu0 %v393
    %997 = vmatpush1.msra.mxu0 %v392
    %998 = vmatprep.subr.mxu0 %v390
    %999 = vmatpush1.msra.mxu0 %v389
    %1000 = vmatprep.subr.mxu0 %v387
    %1001 = vmatpush1.msra.mxu0 %v386
    %1002 = vmatprep.subr.mxu0 %v384
    %1003 = vmatpush1.msra.mxu0 %v383
    %1004 = vmatprep.subr.mxu0 0.0
    %1005 = vmatpush2.msra.mxu0 0.0
    %1006 = vmatprep.subr.mxu0 0.0
    %1007 = vmatpush2.msra.mxu0 0.0
    %1008 = vmatprep.subr.mxu0 0.0
    %1009 = vmatpush2.msra.mxu0 0.0
    %1010 = vmatprep.subr.mxu0 0.0
    %1011 = vmatpush2.msra.mxu0 0.0
    %1012 = vmatprep.subr.mxu0 0.0
    %1013 = vmatpush2.msra.mxu0 0.0
    %1014 = vmatprep.subr.mxu0 0.0
    %1015 = vmatpush2.msra.mxu0 0.0
    %1016 = vmatprep.subr.mxu0 0.0
    %1017 = vmatpush2.msra.mxu0 0.0
    %1018 = vmatprep.subr.mxu0 0.0
    %1019 = vmatpush2.msra.mxu0 0.0
    %1020 = vmatprep.subr.mxu0 0.0
    %1021 = vmatpush2.msra.mxu0 0.0
    %1022 = vmatprep.subr.mxu0 0.0
    %1023 = vmatpush2.msra.mxu0 0.0
    %1024 = vmatprep.subr.mxu0 0.0
    %1025 = vmatpush2.msra.mxu0 0.0
    %1026 = vmatprep.subr.mxu0 0.0
    %1027 = vmatpush2.msra.mxu0 0.0
    %1028 = vmatprep.subr.mxu0 0.0
    %1029 = vmatpush2.msra.mxu0 0.0
    %1030 = vmatprep.subr.mxu0 0.0
    %1031 = vmatpush2.msra.mxu0 0.0
    %1032 = vmatprep.subr.mxu0 0.0
    %1033 = vmatpush2.msra.mxu0 0.0
    %1034 = vmatprep.subr.mxu0 0.0
    %1035 = vmatpush2.msra.mxu0 0.0
    %1036 = vmatprep.mubr.f32.mxu0 0.0
    %1037 = vmatmul.mubr.f32.gmra.mxu0 %v960
    %v1038 = vpop.f32.mrf.mxu0
    %v1039 = vadd.f32 %v436, %v1038
    %v1040 = vpop.f32.mrf.mxu0
    %v1041 = vadd.f32 %v440, %v1040
    %1042 = vdwg.mxu0
    %1043 = vmatprep.subr.mxu0 0.0
    %1044 = vmatpush1.msra.mxu0 %v430
    %1045 = vmatprep.subr.mxu0 0.0
    %1046 = vmatpush1.msra.mxu0 %v427
    %1047 = vmatprep.subr.mxu0 0.0
    %1048 = vmatpush1.msra.mxu0 %v424
    %1049 = vmatprep.subr.mxu0 0.0
    %1050 = vmatpush1.msra.mxu0 %v421
    %1051 = vmatprep.subr.mxu0 0.0
    %1052 = vmatpush1.msra.mxu0 %v418
    %1053 = vmatprep.subr.mxu0 0.0
    %1054 = vmatpush1.msra.mxu0 %v415
    %1055 = vmatprep.subr.mxu0 0.0
    %1056 = vmatpush1.msra.mxu0 %v412
    %1057 = vmatprep.subr.mxu0 0.0
    %1058 = vmatpush1.msra.mxu0 %v409
    %1059 = vmatprep.subr.mxu0 0.0
    %1060 = vmatpush1.msra.mxu0 %v406
    %1061 = vmatprep.subr.mxu0 0.0
    %1062 = vmatpush1.msra.mxu0 %v403
    %1063 = vmatprep.subr.mxu0 0.0
    %1064 = vmatpush1.msra.mxu0 %v400
    %1065 = vmatprep.subr.mxu0 0.0
    %1066 = vmatpush1.msra.mxu0 %v397
    %1067 = vmatprep.subr.mxu0 0.0
    %1068 = vmatpush1.msra.mxu0 %v394
    %1069 = vmatprep.subr.mxu0 0.0
    %1070 = vmatpush1.msra.mxu0 %v391
    %1071 = vmatprep.subr.mxu0 0.0
    %1072 = vmatpush1.msra.mxu0 %v388
    %1073 = vmatprep.subr.mxu0 0.0
    %1074 = vmatpush1.msra.mxu0 %v385
    %1075 = vmatprep.subr.mxu0 0.0
    %1076 = vmatpush2.msra.mxu0 0.0
    %1077 = vmatprep.subr.mxu0 0.0
    %1078 = vmatpush2.msra.mxu0 0.0
    %1079 = vmatprep.subr.mxu0 0.0
    %1080 = vmatpush2.msra.mxu0 0.0
    %1081 = vmatprep.subr.mxu0 0.0
    %1082 = vmatpush2.msra.mxu0 0.0
    %1083 = vmatprep.subr.mxu0 0.0
    %1084 = vmatpush2.msra.mxu0 0.0
    %1085 = vmatprep.subr.mxu0 0.0
    %1086 = vmatpush2.msra.mxu0 0.0
    %1087 = vmatprep.subr.mxu0 0.0
    %1088 = vmatpush2.msra.mxu0 0.0
    %1089 = vmatprep.subr.mxu0 0.0
    %1090 = vmatpush2.msra.mxu0 0.0
    %1091 = vmatprep.subr.mxu0 0.0
    %1092 = vmatpush2.msra.mxu0 0.0
    %1093 = vmatprep.subr.mxu0 0.0
    %1094 = vmatpush2.msra.mxu0 0.0
    %1095 = vmatprep.subr.mxu0 0.0
    %1096 = vmatpush2.msra.mxu0 0.0
    %1097 = vmatprep.subr.mxu0 0.0
    %1098 = vmatpush2.msra.mxu0 0.0
    %1099 = vmatprep.subr.mxu0 0.0
    %1100 = vmatpush2.msra.mxu0 0.0
    %1101 = vmatprep.subr.mxu0 0.0
    %1102 = vmatpush2.msra.mxu0 0.0
    %1103 = vmatprep.subr.mxu0 0.0
    %1104 = vmatpush2.msra.mxu0 0.0
    %1105 = vmatprep.subr.mxu0 0.0
    %1106 = vmatpush2.msra.mxu0 0.0
    %1107 = vmatprep.mubr.f32.mxu0 0.0
    %1108 = vmatmul.mubr.f32.gmra.mxu0 %v960
    %v1109 = vpop.f32.mrf.mxu0
    %v1110 = vadd.f32 %v444, %v1109
    %v1111 = vpop.f32.mrf.mxu0
    %1112 = vdwg.mxu0
    %v1113 = vadd.f32 %v969, %v1039
    %v1114 = vxor.u32 %v1113, 2147483648
    %v1115 = vmul.f32 %v1114, 1.442695
    %v1116 = vpow.pop %v1115
    %v1117 = vadd.f32 %v1116, 1.0
    %v1118 = vrcp.pop %v1117
    %v1119 = vmul.f32 1.0, %v1118
    %v1120 = vadd.f32 %v970, %v1041
    %v1121 = vxor.u32 %v1120, 2147483648
    %v1122 = vmul.f32 %v1121, 1.442695
    %v1123 = vpow.pop %v1122
    %v1124 = vadd.f32 %v1123, 1.0
    %v1125 = vrcp.pop %v1124
    %v1126 = vmul.f32 1.0, %v1125
    %v1127 = vmul.f32 %v1119, %v1110
    %v1128 = vadd.f32 %v971, %v1127
    %v1129 = vtanh.pop %v1128
    %v1130 = vsub.f32 1.0, %v1126
    %v1131 = vmul.f32 %v1130, %v1129
    %v1132 = vmul.f32 %v1126, %v960
    %v1133 = vadd.f32 %v1131, %v1132
    %vm1134 = vcmp.eq.s32.totalorder %v449, 3
    %v1135 = vsel %vm1134, 1, 0
    %1136 = vset.pattern.permute.xlu0 0
    %1137 = vperm.xlu0 %1136, %v1135
    %v1138 = vpop.permute.xlu0 %1137
    %vm1139 = vcmp.eq.s32.totalorder %v1138, 1
    %v1140 = vsel %vm1139, %v1133, %v967
    %s1141 = scalar_lea.vmem [#allocation2], 96
    %v1142 = vld [vmem:[%s1141] sm:$0xff]
    %v1143 = vld [vmem:[%s1141 + $0x8] sm:$0xff]
    %v1144 = vld [vmem:[%s1141 + $0x10] sm:$0xff]
    %1145 = vmatprep.subr.mxu0 %v429
    %1146 = vmatpush1.msra.mxu0 %v428
    %1147 = vmatprep.subr.mxu0 %v426
    %1148 = vmatpush1.msra.mxu0 %v425
    %1149 = vmatprep.subr.mxu0 %v423
    %1150 = vmatpush1.msra.mxu0 %v422
    %1151 = vmatprep.subr.mxu0 %v420
    %1152 = vmatpush1.msra.mxu0 %v419
    %1153 = vmatprep.subr.mxu0 %v417
    %1154 = vmatpush1.msra.mxu0 %v416
    %1155 = vmatprep.subr.mxu0 %v414
    %1156 = vmatpush1.msra.mxu0 %v413
    %1157 = vmatprep.subr.mxu0 %v411
    %1158 = vmatpush1.msra.mxu0 %v410
    %1159 = vmatprep.subr.mxu0 %v408
    %1160 = vmatpush1.msra.mxu0 %v407
    %1161 = vmatprep.subr.mxu0 %v405
    %1162 = vmatpush1.msra.mxu0 %v404
    %1163 = vmatprep.subr.mxu0 %v402
    %1164 = vmatpush1.msra.mxu0 %v401
    %1165 = vmatprep.subr.mxu0 %v399
    %1166 = vmatpush1.msra.mxu0 %v398
    %1167 = vmatprep.subr.mxu0 %v396
    %1168 = vmatpush1.msra.mxu0 %v395
    %1169 = vmatprep.subr.mxu0 %v393
    %1170 = vmatpush1.msra.mxu0 %v392
    %1171 = vmatprep.subr.mxu0 %v390
    %1172 = vmatpush1.msra.mxu0 %v389
    %1173 = vmatprep.subr.mxu0 %v387
    %1174 = vmatpush1.msra.mxu0 %v386
    %1175 = vmatprep.subr.mxu0 %v384
    %1176 = vmatpush1.msra.mxu0 %v383
    %1177 = vmatprep.subr.mxu0 0.0
    %1178 = vmatpush2.msra.mxu0 0.0
    %1179 = vmatprep.subr.mxu0 0.0
    %1180 = vmatpush2.msra.mxu0 0.0
    %1181 = vmatprep.subr.mxu0 0.0
    %1182 = vmatpush2.msra.mxu0 0.0
    %1183 = vmatprep.subr.mxu0 0.0
    %1184 = vmatpush2.msra.mxu0 0.0
    %1185 = vmatprep.subr.mxu0 0.0
    %1186 = vmatpush2.msra.mxu0 0.0
    %1187 = vmatprep.subr.mxu0 0.0
    %1188 = vmatpush2.msra.mxu0 0.0
    %1189 = vmatprep.subr.mxu0 0.0
    %1190 = vmatpush2.msra.mxu0 0.0
    %1191 = vmatprep.subr.mxu0 0.0
    %1192 = vmatpush2.msra.mxu0 0.0
    %1193 = vmatprep.subr.mxu0 0.0
    %1194 = vmatpush2.msra.mxu0 0.0
    %1195 = vmatprep.subr.mxu0 0.0
    %1196 = vmatpush2.msra.mxu0 0.0
    %1197 = vmatprep.subr.mxu0 0.0
    %1198 = vmatpush2.msra.mxu0 0.0
    %1199 = vmatprep.subr.mxu0 0.0
    %1200 = vmatpush2.msra.mxu0 0.0
    %1201 = vmatprep.subr.mxu0 0.0
    %1202 = vmatpush2.msra.mxu0 0.0
    %1203 = vmatprep.subr.mxu0 0.0
    %1204 = vmatpush2.msra.mxu0 0.0
    %1205 = vmatprep.subr.mxu0 0.0
    %1206 = vmatpush2.msra.mxu0 0.0
    %1207 = vmatprep.subr.mxu0 0.0
    %1208 = vmatpush2.msra.mxu0 0.0
    %1209 = vmatprep.mubr.f32.mxu0 0.0
    %1210 = vmatmul.mubr.f32.gmra.mxu0 %v1133
    %v1211 = vpop.f32.mrf.mxu0
    %v1212 = vadd.f32 %v436, %v1211
    %v1213 = vpop.f32.mrf.mxu0
    %v1214 = vadd.f32 %v440, %v1213
    %1215 = vdwg.mxu0
    %1216 = vmatprep.subr.mxu0 0.0
    %1217 = vmatpush1.msra.mxu0 %v430
    %1218 = vmatprep.subr.mxu0 0.0
    %1219 = vmatpush1.msra.mxu0 %v427
    %1220 = vmatprep.subr.mxu0 0.0
    %1221 = vmatpush1.msra.mxu0 %v424
    %1222 = vmatprep.subr.mxu0 0.0
    %1223 = vmatpush1.msra.mxu0 %v421
    %1224 = vmatprep.subr.mxu0 0.0
    %1225 = vmatpush1.msra.mxu0 %v418
    %1226 = vmatprep.subr.mxu0 0.0
    %1227 = vmatpush1.msra.mxu0 %v415
    %1228 = vmatprep.subr.mxu0 0.0
    %1229 = vmatpush1.msra.mxu0 %v412
    %1230 = vmatprep.subr.mxu0 0.0
    %1231 = vmatpush1.msra.mxu0 %v409
    %1232 = vmatprep.subr.mxu0 0.0
    %1233 = vmatpush1.msra.mxu0 %v406
    %1234 = vmatprep.subr.mxu0 0.0
    %1235 = vmatpush1.msra.mxu0 %v403
    %1236 = vmatprep.subr.mxu0 0.0
    %1237 = vmatpush1.msra.mxu0 %v400
    %1238 = vmatprep.subr.mxu0 0.0
    %1239 = vmatpush1.msra.mxu0 %v397
    %1240 = vmatprep.subr.mxu0 0.0
    %1241 = vmatpush1.msra.mxu0 %v394
    %1242 = vmatprep.subr.mxu0 0.0
    %1243 = vmatpush1.msra.mxu0 %v391
    %1244 = vmatprep.subr.mxu0 0.0
    %1245 = vmatpush1.msra.mxu0 %v388
    %1246 = vmatprep.subr.mxu0 0.0
    %1247 = vmatpush1.msra.mxu0 %v385
    %1248 = vmatprep.subr.mxu0 0.0
    %1249 = vmatpush2.msra.mxu0 0.0
    %1250 = vmatprep.subr.mxu0 0.0
    %1251 = vmatpush2.msra.mxu0 0.0
    %1252 = vmatprep.subr.mxu0 0.0
    %1253 = vmatpush2.msra.mxu0 0.0
    %1254 = vmatprep.subr.mxu0 0.0
    %1255 = vmatpush2.msra.mxu0 0.0
    %1256 = vmatprep.subr.mxu0 0.0
    %1257 = vmatpush2.msra.mxu0 0.0
    %1258 = vmatprep.subr.mxu0 0.0
    %1259 = vmatpush2.msra.mxu0 0.0
    %1260 = vmatprep.subr.mxu0 0.0
    %1261 = vmatpush2.msra.mxu0 0.0
    %1262 = vmatprep.subr.mxu0 0.0
    %1263 = vmatpush2.msra.mxu0 0.0
    %1264 = vmatprep.subr.mxu0 0.0
    %1265 = vmatpush2.msra.mxu0 0.0
    %1266 = vmatprep.subr.mxu0 0.0
    %1267 = vmatpush2.msra.mxu0 0.0
    %1268 = vmatprep.subr.mxu0 0.0
    %1269 = vmatpush2.msra.mxu0 0.0
    %1270 = vmatprep.subr.mxu0 0.0
    %1271 = vmatpush2.msra.mxu0 0.0
    %1272 = vmatprep.subr.mxu0 0.0
    %1273 = vmatpush2.msra.mxu0 0.0
    %1274 = vmatprep.subr.mxu0 0.0
    %1275 = vmatpush2.msra.mxu0 0.0
    %1276 = vmatprep.subr.mxu0 0.0
    %1277 = vmatpush2.msra.mxu0 0.0
    %1278 = vmatprep.subr.mxu0 0.0
    %1279 = vmatpush2.msra.mxu0 0.0
    %1280 = vmatprep.mubr.f32.mxu0 0.0
    %1281 = vmatmul.mubr.f32.gmra.mxu0 %v1133
    %v1282 = vpop.f32.mrf.mxu0
    %v1283 = vadd.f32 %v444, %v1282
    %v1284 = vpop.f32.mrf.mxu0
    %1285 = vdwg.mxu0
    %v1286 = vadd.f32 %v1142, %v1212
    %v1287 = vxor.u32 %v1286, 2147483648
    %v1288 = vmul.f32 %v1287, 1.442695
    %v1289 = vpow.pop %v1288
    %v1290 = vadd.f32 %v1289, 1.0
    %v1291 = vrcp.pop %v1290
    %v1292 = vmul.f32 1.0, %v1291
    %v1293 = vadd.f32 %v1143, %v1214
    %v1294 = vxor.u32 %v1293, 2147483648
    %v1295 = vmul.f32 %v1294, 1.442695
    %v1296 = vpow.pop %v1295
    %v1297 = vadd.f32 %v1296, 1.0
    %v1298 = vrcp.pop %v1297
    %v1299 = vmul.f32 1.0, %v1298
    %v1300 = vmul.f32 %v1292, %v1283
    %v1301 = vadd.f32 %v1144, %v1300
    %v1302 = vtanh.pop %v1301
    %v1303 = vsub.f32 1.0, %v1299
    %v1304 = vmul.f32 %v1303, %v1302
    %v1305 = vmul.f32 %v1299, %v1133
    %v1306 = vadd.f32 %v1304, %v1305
    %vm1307 = vcmp.eq.s32.totalorder %v449, 4
    %v1308 = vsel %vm1307, 1, 0
    %1309 = vset.pattern.permute.xlu0 0
    %1310 = vperm.xlu0 %1309, %v1308
    %v1311 = vpop.permute.xlu0 %1310
    %vm1312 = vcmp.eq.s32.totalorder %v1311, 1
    %v1313 = vsel %vm1312, %v1306, %v1140
    %s1314 = scalar_lea.vmem [#allocation2], 120
    %v1315 = vld [vmem:[%s1314] sm:$0xff]
    %v1316 = vld [vmem:[%s1314 + $0x8] sm:$0xff]
    %v1317 = vld [vmem:[%s1314 + $0x10] sm:$0xff]
    %1318 = vmatprep.subr.mxu0 %v429
    %1319 = vmatpush1.msra.mxu0 %v428
    %1320 = vmatprep.subr.mxu0 %v426
    %1321 = vmatpush1.msra.mxu0 %v425
    %1322 = vmatprep.subr.mxu0 %v423
    %1323 = vmatpush1.msra.mxu0 %v422
    %1324 = vmatprep.subr.mxu0 %v420
    %1325 = vmatpush1.msra.mxu0 %v419
    %1326 = vmatprep.subr.mxu0 %v417
    %1327 = vmatpush1.msra.mxu0 %v416
    %1328 = vmatprep.subr.mxu0 %v414
    %1329 = vmatpush1.msra.mxu0 %v413
    %1330 = vmatprep.subr.mxu0 %v411
    %1331 = vmatpush1.msra.mxu0 %v410
    %1332 = vmatprep.subr.mxu0 %v408
    %1333 = vmatpush1.msra.mxu0 %v407
    %1334 = vmatprep.subr.mxu0 %v405
    %1335 = vmatpush1.msra.mxu0 %v404
    %1336 = vmatprep.subr.mxu0 %v402
    %1337 = vmatpush1.msra.mxu0 %v401
    %1338 = vmatprep.subr.mxu0 %v399
    %1339 = vmatpush1.msra.mxu0 %v398
    %1340 = vmatprep.subr.mxu0 %v396
    %1341 = vmatpush1.msra.mxu0 %v395
    %1342 = vmatprep.subr.mxu0 %v393
    %1343 = vmatpush1.msra.mxu0 %v392
    %1344 = vmatprep.subr.mxu0 %v390
    %1345 = vmatpush1.msra.mxu0 %v389
    %1346 = vmatprep.subr.mxu0 %v387
    %1347 = vmatpush1.msra.mxu0 %v386
    %1348 = vmatprep.subr.mxu0 %v384
    %1349 = vmatpush1.msra.mxu0 %v383
    %1350 = vmatprep.subr.mxu0 0.0
    %1351 = vmatpush2.msra.mxu0 0.0
    %1352 = vmatprep.subr.mxu0 0.0
    %1353 = vmatpush2.msra.mxu0 0.0
    %1354 = vmatprep.subr.mxu0 0.0
    %1355 = vmatpush2.msra.mxu0 0.0
    %1356 = vmatprep.subr.mxu0 0.0
    %1357 = vmatpush2.msra.mxu0 0.0
    %1358 = vmatprep.subr.mxu0 0.0
    %1359 = vmatpush2.msra.mxu0 0.0
    %1360 = vmatprep.subr.mxu0 0.0
    %1361 = vmatpush2.msra.mxu0 0.0
    %1362 = vmatprep.subr.mxu0 0.0
    %1363 = vmatpush2.msra.mxu0 0.0
    %1364 = vmatprep.subr.mxu0 0.0
    %1365 = vmatpush2.msra.mxu0 0.0
    %1366 = vmatprep.subr.mxu0 0.0
    %1367 = vmatpush2.msra.mxu0 0.0
    %1368 = vmatprep.subr.mxu0 0.0
    %1369 = vmatpush2.msra.mxu0 0.0
    %1370 = vmatprep.subr.mxu0 0.0
    %1371 = vmatpush2.msra.mxu0 0.0
    %1372 = vmatprep.subr.mxu0 0.0
    %1373 = vmatpush2.msra.mxu0 0.0
    %1374 = vmatprep.subr.mxu0 0.0
    %1375 = vmatpush2.msra.mxu0 0.0
    %1376 = vmatprep.subr.mxu0 0.0
    %1377 = vmatpush2.msra.mxu0 0.0
    %1378 = vmatprep.subr.mxu0 0.0
    %1379 = vmatpush2.msra.mxu0 0.0
    %1380 = vmatprep.subr.mxu0 0.0
    %1381 = vmatpush2.msra.mxu0 0.0
    %1382 = vmatprep.mubr.f32.mxu0 0.0
    %1383 = vmatmul.mubr.f32.gmra.mxu0 %v1306
    %v1384 = vpop.f32.mrf.mxu0
    %v1385 = vadd.f32 %v436, %v1384
    %v1386 = vpop.f32.mrf.mxu0
    %v1387 = vadd.f32 %v440, %v1386
    %1388 = vdwg.mxu0
    %1389 = vmatprep.subr.mxu0 0.0
    %1390 = vmatpush1.msra.mxu0 %v430
    %1391 = vmatprep.subr.mxu0 0.0
    %1392 = vmatpush1.msra.mxu0 %v427
    %1393 = vmatprep.subr.mxu0 0.0
    %1394 = vmatpush1.msra.mxu0 %v424
    %1395 = vmatprep.subr.mxu0 0.0
    %1396 = vmatpush1.msra.mxu0 %v421
    %1397 = vmatprep.subr.mxu0 0.0
    %1398 = vmatpush1.msra.mxu0 %v418
    %1399 = vmatprep.subr.mxu0 0.0
    %1400 = vmatpush1.msra.mxu0 %v415
    %1401 = vmatprep.subr.mxu0 0.0
    %1402 = vmatpush1.msra.mxu0 %v412
    %1403 = vmatprep.subr.mxu0 0.0
    %1404 = vmatpush1.msra.mxu0 %v409
    %1405 = vmatprep.subr.mxu0 0.0
    %1406 = vmatpush1.msra.mxu0 %v406
    %1407 = vmatprep.subr.mxu0 0.0
    %1408 = vmatpush1.msra.mxu0 %v403
    %1409 = vmatprep.subr.mxu0 0.0
    %1410 = vmatpush1.msra.mxu0 %v400
    %1411 = vmatprep.subr.mxu0 0.0
    %1412 = vmatpush1.msra.mxu0 %v397
    %1413 = vmatprep.subr.mxu0 0.0
    %1414 = vmatpush1.msra.mxu0 %v394
    %1415 = vmatprep.subr.mxu0 0.0
    %1416 = vmatpush1.msra.mxu0 %v391
    %1417 = vmatprep.subr.mxu0 0.0
    %1418 = vmatpush1.msra.mxu0 %v388
    %1419 = vmatprep.subr.mxu0 0.0
    %1420 = vmatpush1.msra.mxu0 %v385
    %1421 = vmatprep.subr.mxu0 0.0
    %1422 = vmatpush2.msra.mxu0 0.0
    %1423 = vmatprep.subr.mxu0 0.0
    %1424 = vmatpush2.msra.mxu0 0.0
    %1425 = vmatprep.subr.mxu0 0.0
    %1426 = vmatpush2.msra.mxu0 0.0
    %1427 = vmatprep.subr.mxu0 0.0
    %1428 = vmatpush2.msra.mxu0 0.0
    %1429 = vmatprep.subr.mxu0 0.0
    %1430 = vmatpush2.msra.mxu0 0.0
    %1431 = vmatprep.subr.mxu0 0.0
    %1432 = vmatpush2.msra.mxu0 0.0
    %1433 = vmatprep.subr.mxu0 0.0
    %1434 = vmatpush2.msra.mxu0 0.0
    %1435 = vmatprep.subr.mxu0 0.0
    %1436 = vmatpush2.msra.mxu0 0.0
    %1437 = vmatprep.subr.mxu0 0.0
    %1438 = vmatpush2.msra.mxu0 0.0
    %1439 = vmatprep.subr.mxu0 0.0
    %1440 = vmatpush2.msra.mxu0 0.0
    %1441 = vmatprep.subr.mxu0 0.0
    %1442 = vmatpush2.msra.mxu0 0.0
    %1443 = vmatprep.subr.mxu0 0.0
    %1444 = vmatpush2.msra.mxu0 0.0
    %1445 = vmatprep.subr.mxu0 0.0
    %1446 = vmatpush2.msra.mxu0 0.0
    %1447 = vmatprep.subr.mxu0 0.0
    %1448 = vmatpush2.msra.mxu0 0.0
    %1449 = vmatprep.subr.mxu0 0.0
    %1450 = vmatpush2.msra.mxu0 0.0
    %1451 = vmatprep.subr.mxu0 0.0
    %1452 = vmatpush2.msra.mxu0 0.0
    %1453 = vmatprep.mubr.f32.mxu0 0.0
    %1454 = vmatmul.mubr.f32.gmra.mxu0 %v1306
    %v1455 = vpop.f32.mrf.mxu0
    %v1456 = vadd.f32 %v444, %v1455
    %v1457 = vpop.f32.mrf.mxu0
    %1458 = vdwg.mxu0
    %v1459 = vadd.f32 %v1315, %v1385
    %v1460 = vxor.u32 %v1459, 2147483648
    %v1461 = vmul.f32 %v1460, 1.442695
    %v1462 = vpow.pop %v1461
    %v1463 = vadd.f32 %v1462, 1.0
    %v1464 = vrcp.pop %v1463
    %v1465 = vmul.f32 1.0, %v1464
    %v1466 = vadd.f32 %v1316, %v1387
    %v1467 = vxor.u32 %v1466, 2147483648
    %v1468 = vmul.f32 %v1467, 1.442695
    %v1469 = vpow.pop %v1468
    %v1470 = vadd.f32 %v1469, 1.0
    %v1471 = vrcp.pop %v1470
    %v1472 = vmul.f32 1.0, %v1471
    %v1473 = vmul.f32 %v1465, %v1456
    %v1474 = vadd.f32 %v1317, %v1473
    %v1475 = vtanh.pop %v1474
    %v1476 = vsub.f32 1.0, %v1472
    %v1477 = vmul.f32 %v1476, %v1475
    %v1478 = vmul.f32 %v1472, %v1306
    %v1479 = vadd.f32 %v1477, %v1478
    %vm1480 = vcmp.eq.s32.totalorder %v449, 5
    %v1481 = vsel %vm1480, 1, 0
    %1482 = vset.pattern.permute.xlu0 0
    %1483 = vperm.xlu0 %1482, %v1481
    %v1484 = vpop.permute.xlu0 %1483
    %vm1485 = vcmp.eq.s32.totalorder %v1484, 1
    %v1486 = vsel %vm1485, %v1479, %v1313
    %s1487 = scalar_lea.vmem [#allocation2], 144
    %v1488 = vld [vmem:[%s1487] sm:$0xff]
    %v1489 = vld [vmem:[%s1487 + $0x8] sm:$0xff]
    %v1490 = vld [vmem:[%s1487 + $0x10] sm:$0xff]
    %1491 = vmatprep.subr.mxu0 %v429
    %1492 = vmatpush1.msra.mxu0 %v428
    %1493 = vmatprep.subr.mxu0 %v426
    %1494 = vmatpush1.msra.mxu0 %v425
    %1495 = vmatprep.subr.mxu0 %v423
    %1496 = vmatpush1.msra.mxu0 %v422
    %1497 = vmatprep.subr.mxu0 %v420
    %1498 = vmatpush1.msra.mxu0 %v419
    %1499 = vmatprep.subr.mxu0 %v417
    %1500 = vmatpush1.msra.mxu0 %v416
    %1501 = vmatprep.subr.mxu0 %v414
    %1502 = vmatpush1.msra.mxu0 %v413
    %1503 = vmatprep.subr.mxu0 %v411
    %1504 = vmatpush1.msra.mxu0 %v410
    %1505 = vmatprep.subr.mxu0 %v408
    %1506 = vmatpush1.msra.mxu0 %v407
    %1507 = vmatprep.subr.mxu0 %v405
    %1508 = vmatpush1.msra.mxu0 %v404
    %1509 = vmatprep.subr.mxu0 %v402
    %1510 = vmatpush1.msra.mxu0 %v401
    %1511 = vmatprep.subr.mxu0 %v399
    %1512 = vmatpush1.msra.mxu0 %v398
    %1513 = vmatprep.subr.mxu0 %v396
    %1514 = vmatpush1.msra.mxu0 %v395
    %1515 = vmatprep.subr.mxu0 %v393
    %1516 = vmatpush1.msra.mxu0 %v392
    %1517 = vmatprep.subr.mxu0 %v390
    %1518 = vmatpush1.msra.mxu0 %v389
    %1519 = vmatprep.subr.mxu0 %v387
    %1520 = vmatpush1.msra.mxu0 %v386
    %1521 = vmatprep.subr.mxu0 %v384
    %1522 = vmatpush1.msra.mxu0 %v383
    %1523 = vmatprep.subr.mxu0 0.0
    %1524 = vmatpush2.msra.mxu0 0.0
    %1525 = vmatprep.subr.mxu0 0.0
    %1526 = vmatpush2.msra.mxu0 0.0
    %1527 = vmatprep.subr.mxu0 0.0
    %1528 = vmatpush2.msra.mxu0 0.0
    %1529 = vmatprep.subr.mxu0 0.0
    %1530 = vmatpush2.msra.mxu0 0.0
    %1531 = vmatprep.subr.mxu0 0.0
    %1532 = vmatpush2.msra.mxu0 0.0
    %1533 = vmatprep.subr.mxu0 0.0
    %1534 = vmatpush2.msra.mxu0 0.0
    %1535 = vmatprep.subr.mxu0 0.0
    %1536 = vmatpush2.msra.mxu0 0.0
    %1537 = vmatprep.subr.mxu0 0.0
    %1538 = vmatpush2.msra.mxu0 0.0
    %1539 = vmatprep.subr.mxu0 0.0
    %1540 = vmatpush2.msra.mxu0 0.0
    %1541 = vmatprep.subr.mxu0 0.0
    %1542 = vmatpush2.msra.mxu0 0.0
    %1543 = vmatprep.subr.mxu0 0.0
    %1544 = vmatpush2.msra.mxu0 0.0
    %1545 = vmatprep.subr.mxu0 0.0
    %1546 = vmatpush2.msra.mxu0 0.0
    %1547 = vmatprep.subr.mxu0 0.0
    %1548 = vmatpush2.msra.mxu0 0.0
    %1549 = vmatprep.subr.mxu0 0.0
    %1550 = vmatpush2.msra.mxu0 0.0
    %1551 = vmatprep.subr.mxu0 0.0
    %1552 = vmatpush2.msra.mxu0 0.0
    %1553 = vmatprep.subr.mxu0 0.0
    %1554 = vmatpush2.msra.mxu0 0.0
    %1555 = vmatprep.mubr.f32.mxu0 0.0
    %1556 = vmatmul.mubr.f32.gmra.mxu0 %v1479
    %v1557 = vpop.f32.mrf.mxu0
    %v1558 = vadd.f32 %v436, %v1557
    %v1559 = vpop.f32.mrf.mxu0
    %v1560 = vadd.f32 %v440, %v1559
    %1561 = vdwg.mxu0
    %1562 = vmatprep.subr.mxu0 0.0
    %1563 = vmatpush1.msra.mxu0 %v430
    %1564 = vmatprep.subr.mxu0 0.0
    %1565 = vmatpush1.msra.mxu0 %v427
    %1566 = vmatprep.subr.mxu0 0.0
    %1567 = vmatpush1.msra.mxu0 %v424
    %1568 = vmatprep.subr.mxu0 0.0
    %1569 = vmatpush1.msra.mxu0 %v421
    %1570 = vmatprep.subr.mxu0 0.0
    %1571 = vmatpush1.msra.mxu0 %v418
    %1572 = vmatprep.subr.mxu0 0.0
    %1573 = vmatpush1.msra.mxu0 %v415
    %1574 = vmatprep.subr.mxu0 0.0
    %1575 = vmatpush1.msra.mxu0 %v412
    %1576 = vmatprep.subr.mxu0 0.0
    %1577 = vmatpush1.msra.mxu0 %v409
    %1578 = vmatprep.subr.mxu0 0.0
    %1579 = vmatpush1.msra.mxu0 %v406
    %1580 = vmatprep.subr.mxu0 0.0
    %1581 = vmatpush1.msra.mxu0 %v403
    %1582 = vmatprep.subr.mxu0 0.0
    %1583 = vmatpush1.msra.mxu0 %v400
    %1584 = vmatprep.subr.mxu0 0.0
    %1585 = vmatpush1.msra.mxu0 %v397
    %1586 = vmatprep.subr.mxu0 0.0
    %1587 = vmatpush1.msra.mxu0 %v394
    %1588 = vmatprep.subr.mxu0 0.0
    %1589 = vmatpush1.msra.mxu0 %v391
    %1590 = vmatprep.subr.mxu0 0.0
    %1591 = vmatpush1.msra.mxu0 %v388
    %1592 = vmatprep.subr.mxu0 0.0
    %1593 = vmatpush1.msra.mxu0 %v385
    %1594 = vmatprep.subr.mxu0 0.0
    %1595 = vmatpush2.msra.mxu0 0.0
    %1596 = vmatprep.subr.mxu0 0.0
    %1597 = vmatpush2.msra.mxu0 0.0
    %1598 = vmatprep.subr.mxu0 0.0
    %1599 = vmatpush2.msra.mxu0 0.0
    %1600 = vmatprep.subr.mxu0 0.0
    %1601 = vmatpush2.msra.mxu0 0.0
    %1602 = vmatprep.subr.mxu0 0.0
    %1603 = vmatpush2.msra.mxu0 0.0
    %1604 = vmatprep.subr.mxu0 0.0
    %1605 = vmatpush2.msra.mxu0 0.0
    %1606 = vmatprep.subr.mxu0 0.0
    %1607 = vmatpush2.msra.mxu0 0.0
    %1608 = vmatprep.subr.mxu0 0.0
    %1609 = vmatpush2.msra.mxu0 0.0
    %1610 = vmatprep.subr.mxu0 0.0
    %1611 = vmatpush2.msra.mxu0 0.0
    %1612 = vmatprep.subr.mxu0 0.0
    %1613 = vmatpush2.msra.mxu0 0.0
    %1614 = vmatprep.subr.mxu0 0.0
    %1615 = vmatpush2.msra.mxu0 0.0
    %1616 = vmatprep.subr.mxu0 0.0
    %1617 = vmatpush2.msra.mxu0 0.0
    %1618 = vmatprep.subr.mxu0 0.0
    %1619 = vmatpush2.msra.mxu0 0.0
    %1620 = vmatprep.subr.mxu0 0.0
    %1621 = vmatpush2.msra.mxu0 0.0
    %1622 = vmatprep.subr.mxu0 0.0
    %1623 = vmatpush2.msra.mxu0 0.0
    %1624 = vmatprep.subr.mxu0 0.0
    %1625 = vmatpush2.msra.mxu0 0.0
    %1626 = vmatprep.mubr.f32.mxu0 0.0
    %1627 = vmatmul.mubr.f32.gmra.mxu0 %v1479
    %v1628 = vpop.f32.mrf.mxu0
    %v1629 = vadd.f32 %v444, %v1628
    %v1630 = vpop.f32.mrf.mxu0
    %1631 = vdwg.mxu0
    %v1632 = vadd.f32 %v1488, %v1558
    %v1633 = vxor.u32 %v1632, 2147483648
    %v1634 = vmul.f32 %v1633, 1.442695
    %v1635 = vpow.pop %v1634
    %v1636 = vadd.f32 %v1635, 1.0
    %v1637 = vrcp.pop %v1636
    %v1638 = vmul.f32 1.0, %v1637
    %v1639 = vadd.f32 %v1489, %v1560
    %v1640 = vxor.u32 %v1639, 2147483648
    %v1641 = vmul.f32 %v1640, 1.442695
    %v1642 = vpow.pop %v1641
    %v1643 = vadd.f32 %v1642, 1.0
    %v1644 = vrcp.pop %v1643
    %v1645 = vmul.f32 1.0, %v1644
    %v1646 = vmul.f32 %v1638, %v1629
    %v1647 = vadd.f32 %v1490, %v1646
    %v1648 = vtanh.pop %v1647
    %v1649 = vsub.f32 1.0, %v1645
    %v1650 = vmul.f32 %v1649, %v1648
    %v1651 = vmul.f32 %v1645, %v1479
    %v1652 = vadd.f32 %v1650, %v1651
    %vm1653 = vcmp.eq.s32.totalorder %v449, 6
    %v1654 = vsel %vm1653, 1, 0
    %1655 = vset.pattern.permute.xlu0 0
    %1656 = vperm.xlu0 %1655, %v1654
    %v1657 = vpop.permute.xlu0 %1656
    %vm1658 = vcmp.eq.s32.totalorder %v1657, 1
    %v1659 = vsel %vm1658, %v1652, %v1486
    %s1660 = scalar_lea.vmem [#allocation2], 168
    %v1661 = vld [vmem:[%s1660] sm:$0xff]
    %v1662 = vld [vmem:[%s1660 + $0x8] sm:$0xff]
    %v1663 = vld [vmem:[%s1660 + $0x10] sm:$0xff]
    %1664 = vmatprep.subr.mxu0 %v429
    %1665 = vmatpush1.msra.mxu0 %v428
    %1666 = vmatprep.subr.mxu0 %v426
    %1667 = vmatpush1.msra.mxu0 %v425
    %1668 = vmatprep.subr.mxu0 %v423
    %1669 = vmatpush1.msra.mxu0 %v422
    %1670 = vmatprep.subr.mxu0 %v420
    %1671 = vmatpush1.msra.mxu0 %v419
    %1672 = vmatprep.subr.mxu0 %v417
    %1673 = vmatpush1.msra.mxu0 %v416
    %1674 = vmatprep.subr.mxu0 %v414
    %1675 = vmatpush1.msra.mxu0 %v413
    %1676 = vmatprep.subr.mxu0 %v411
    %1677 = vmatpush1.msra.mxu0 %v410
    %1678 = vmatprep.subr.mxu0 %v408
    %1679 = vmatpush1.msra.mxu0 %v407
    %1680 = vmatprep.subr.mxu0 %v405
    %1681 = vmatpush1.msra.mxu0 %v404
    %1682 = vmatprep.subr.mxu0 %v402
    %1683 = vmatpush1.msra.mxu0 %v401
    %1684 = vmatprep.subr.mxu0 %v399
    %1685 = vmatpush1.msra.mxu0 %v398
    %1686 = vmatprep.subr.mxu0 %v396
    %1687 = vmatpush1.msra.mxu0 %v395
    %1688 = vmatprep.subr.mxu0 %v393
    %1689 = vmatpush1.msra.mxu0 %v392
    %1690 = vmatprep.subr.mxu0 %v390
    %1691 = vmatpush1.msra.mxu0 %v389
    %1692 = vmatprep.subr.mxu0 %v387
    %1693 = vmatpush1.msra.mxu0 %v386
    %1694 = vmatprep.subr.mxu0 %v384
    %1695 = vmatpush1.msra.mxu0 %v383
    %1696 = vmatprep.subr.mxu0 0.0
    %1697 = vmatpush2.msra.mxu0 0.0
    %1698 = vmatprep.subr.mxu0 0.0
    %1699 = vmatpush2.msra.mxu0 0.0
    %1700 = vmatprep.subr.mxu0 0.0
    %1701 = vmatpush2.msra.mxu0 0.0
    %1702 = vmatprep.subr.mxu0 0.0
    %1703 = vmatpush2.msra.mxu0 0.0
    %1704 = vmatprep.subr.mxu0 0.0
    %1705 = vmatpush2.msra.mxu0 0.0
    %1706 = vmatprep.subr.mxu0 0.0
    %1707 = vmatpush2.msra.mxu0 0.0
    %1708 = vmatprep.subr.mxu0 0.0
    %1709 = vmatpush2.msra.mxu0 0.0
    %1710 = vmatprep.subr.mxu0 0.0
    %1711 = vmatpush2.msra.mxu0 0.0
    %1712 = vmatprep.subr.mxu0 0.0
    %1713 = vmatpush2.msra.mxu0 0.0
    %1714 = vmatprep.subr.mxu0 0.0
    %1715 = vmatpush2.msra.mxu0 0.0
    %1716 = vmatprep.subr.mxu0 0.0
    %1717 = vmatpush2.msra.mxu0 0.0
    %1718 = vmatprep.subr.mxu0 0.0
    %1719 = vmatpush2.msra.mxu0 0.0
    %1720 = vmatprep.subr.mxu0 0.0
    %1721 = vmatpush2.msra.mxu0 0.0
    %1722 = vmatprep.subr.mxu0 0.0
    %1723 = vmatpush2.msra.mxu0 0.0
    %1724 = vmatprep.subr.mxu0 0.0
    %1725 = vmatpush2.msra.mxu0 0.0
    %1726 = vmatprep.subr.mxu0 0.0
    %1727 = vmatpush2.msra.mxu0 0.0
    %1728 = vmatprep.mubr.f32.mxu0 0.0
    %1729 = vmatmul.mubr.f32.gmra.mxu0 %v1652
    %v1730 = vpop.f32.mrf.mxu0
    %v1731 = vadd.f32 %v436, %v1730
    %v1732 = vpop.f32.mrf.mxu0
    %v1733 = vadd.f32 %v440, %v1732
    %1734 = vdwg.mxu0
    %1735 = vmatprep.subr.mxu0 0.0
    %1736 = vmatpush1.msra.mxu0 %v430
    %1737 = vmatprep.subr.mxu0 0.0
    %1738 = vmatpush1.msra.mxu0 %v427
    %1739 = vmatprep.subr.mxu0 0.0
    %1740 = vmatpush1.msra.mxu0 %v424
    %1741 = vmatprep.subr.mxu0 0.0
    %1742 = vmatpush1.msra.mxu0 %v421
    %1743 = vmatprep.subr.mxu0 0.0
    %1744 = vmatpush1.msra.mxu0 %v418
    %1745 = vmatprep.subr.mxu0 0.0
    %1746 = vmatpush1.msra.mxu0 %v415
    %1747 = vmatprep.subr.mxu0 0.0
    %1748 = vmatpush1.msra.mxu0 %v412
    %1749 = vmatprep.subr.mxu0 0.0
    %1750 = vmatpush1.msra.mxu0 %v409
    %1751 = vmatprep.subr.mxu0 0.0
    %1752 = vmatpush1.msra.mxu0 %v406
    %1753 = vmatprep.subr.mxu0 0.0
    %1754 = vmatpush1.msra.mxu0 %v403
    %1755 = vmatprep.subr.mxu0 0.0
    %1756 = vmatpush1.msra.mxu0 %v400
    %1757 = vmatprep.subr.mxu0 0.0
    %1758 = vmatpush1.msra.mxu0 %v397
    %1759 = vmatprep.subr.mxu0 0.0
    %1760 = vmatpush1.msra.mxu0 %v394
    %1761 = vmatprep.subr.mxu0 0.0
    %1762 = vmatpush1.msra.mxu0 %v391
    %1763 = vmatprep.subr.mxu0 0.0
    %1764 = vmatpush1.msra.mxu0 %v388
    %1765 = vmatprep.subr.mxu0 0.0
    %1766 = vmatpush1.msra.mxu0 %v385
    %1767 = vmatprep.subr.mxu0 0.0
    %1768 = vmatpush2.msra.mxu0 0.0
    %1769 = vmatprep.subr.mxu0 0.0
    %1770 = vmatpush2.msra.mxu0 0.0
    %1771 = vmatprep.subr.mxu0 0.0
    %1772 = vmatpush2.msra.mxu0 0.0
    %1773 = vmatprep.subr.mxu0 0.0
    %1774 = vmatpush2.msra.mxu0 0.0
    %1775 = vmatprep.subr.mxu0 0.0
    %1776 = vmatpush2.msra.mxu0 0.0
    %1777 = vmatprep.subr.mxu0 0.0
    %1778 = vmatpush2.msra.mxu0 0.0
    %1779 = vmatprep.subr.mxu0 0.0
    %1780 = vmatpush2.msra.mxu0 0.0
    %1781 = vmatprep.subr.mxu0 0.0
    %1782 = vmatpush2.msra.mxu0 0.0
    %1783 = vmatprep.subr.mxu0 0.0
    %1784 = vmatpush2.msra.mxu0 0.0
    %1785 = vmatprep.subr.mxu0 0.0
    %1786 = vmatpush2.msra.mxu0 0.0
    %1787 = vmatprep.subr.mxu0 0.0
    %1788 = vmatpush2.msra.mxu0 0.0
    %1789 = vmatprep.subr.mxu0 0.0
    %1790 = vmatpush2.msra.mxu0 0.0
    %1791 = vmatprep.subr.mxu0 0.0
    %1792 = vmatpush2.msra.mxu0 0.0
    %1793 = vmatprep.subr.mxu0 0.0
    %1794 = vmatpush2.msra.mxu0 0.0
    %1795 = vmatprep.subr.mxu0 0.0
    %1796 = vmatpush2.msra.mxu0 0.0
    %1797 = vmatprep.subr.mxu0 0.0
    %1798 = vmatpush2.msra.mxu0 0.0
    %1799 = vmatprep.mubr.f32.mxu0 0.0
    %1800 = vmatmul.mubr.f32.gmra.mxu0 %v1652
    %v1801 = vpop.f32.mrf.mxu0
    %v1802 = vadd.f32 %v444, %v1801
    %v1803 = vpop.f32.mrf.mxu0
    %1804 = vdwg.mxu0
    %v1805 = vadd.f32 %v1661, %v1731
    %v1806 = vxor.u32 %v1805, 2147483648
    %v1807 = vmul.f32 %v1806, 1.442695
    %v1808 = vpow.pop %v1807
    %v1809 = vadd.f32 %v1808, 1.0
    %v1810 = vrcp.pop %v1809
    %v1811 = vmul.f32 1.0, %v1810
    %v1812 = vadd.f32 %v1662, %v1733
    %v1813 = vxor.u32 %v1812, 2147483648
    %v1814 = vmul.f32 %v1813, 1.442695
    %v1815 = vpow.pop %v1814
    %v1816 = vadd.f32 %v1815, 1.0
    %v1817 = vrcp.pop %v1816
    %v1818 = vmul.f32 1.0, %v1817
    %v1819 = vmul.f32 %v1811, %v1802
    %v1820 = vadd.f32 %v1663, %v1819
    %v1821 = vtanh.pop %v1820
    %v1822 = vsub.f32 1.0, %v1818
    %v1823 = vmul.f32 %v1822, %v1821
    %v1824 = vmul.f32 %v1818, %v1652
    %v1825 = vadd.f32 %v1823, %v1824
    %vm1826 = vcmp.eq.s32.totalorder %v449, 7
    %v1827 = vsel %vm1826, 1, 0
    %1828 = vset.pattern.permute.xlu0 0
    %1829 = vperm.xlu0 %1828, %v1827
    %v1830 = vpop.permute.xlu0 %1829
    %vm1831 = vcmp.eq.s32.totalorder %v1830, 1
    %v1832 = vsel %vm1831, %v1825, %v1659
    %v1833 = vld [vmem:[#allocation9] sm:$0xff]
    %v1834 = vld [vmem:[#allocation9 + $0x8] sm:$0xff]
    %v1835 = vld [vmem:[#allocation9 + $0x10] sm:$0xff]
    %v1836 = vld [vmem:[#allocation9 + $0x18] sm:$0xff]
    %v1837 = vld [vmem:[#allocation9 + $0x20] sm:$0xff]
    %v1838 = vld [vmem:[#allocation9 + $0x28] sm:$0xff]
    %v1839 = vld [vmem:[#allocation9 + $0x30] sm:$0xff]
    %v1840 = vld [vmem:[#allocation9 + $0x38] sm:$0xff]
    %v1841 = vld [vmem:[#allocation9 + $0x40] sm:$0xff]
    %v1842 = vld [vmem:[#allocation9 + $0x48] sm:$0xff]
    %v1843 = vld [vmem:[#allocation9 + $0x50] sm:$0xff]
    %v1844 = vld [vmem:[#allocation9 + $0x58] sm:$0xff]
    %v1845 = vld [vmem:[#allocation9 + $0x60] sm:$0xff]
    %v1846 = vld [vmem:[#allocation9 + $0x68] sm:$0xff]
    %v1847 = vld [vmem:[#allocation9 + $0x70] sm:$0xff]
    %v1848 = vld [vmem:[#allocation9 + $0x78] sm:$0xff]
    %v1849 = vld [vmem:[%s7] sm:$0x1]
    %v1851 = vlaneseq
    %v1852 = vshrl.u32 %v1851, 7
    %v1853 = vsub.s32 0, %v1852
    %v1854 = vrot.slane %v1849, %v1853
    %1856 = vmatprep.subr.mxu0 0.0
    %1857 = vmatpush1.msra.mxu0 %v1848
    %1858 = vmatprep.subr.mxu0 0.0
    %1859 = vmatpush1.msra.mxu0 %v1847
    %1860 = vmatprep.subr.mxu0 0.0
    %1861 = vmatpush1.msra.mxu0 %v1846
    %1862 = vmatprep.subr.mxu0 0.0
    %1863 = vmatpush1.msra.mxu0 %v1845
    %1864 = vmatprep.subr.mxu0 0.0
    %1865 = vmatpush1.msra.mxu0 %v1844
    %1866 = vmatprep.subr.mxu0 0.0
    %1867 = vmatpush1.msra.mxu0 %v1843
    %1868 = vmatprep.subr.mxu0 0.0
    %1869 = vmatpush1.msra.mxu0 %v1842
    %1870 = vmatprep.subr.mxu0 0.0
    %1871 = vmatpush1.msra.mxu0 %v1841
    %1872 = vmatprep.subr.mxu0 0.0
    %1873 = vmatpush1.msra.mxu0 %v1840
    %1874 = vmatprep.subr.mxu0 0.0
    %1875 = vmatpush1.msra.mxu0 %v1839
    %1876 = vmatprep.subr.mxu0 0.0
    %1877 = vmatpush1.msra.mxu0 %v1838
    %1878 = vmatprep.subr.mxu0 0.0
    %1879 = vmatpush1.msra.mxu0 %v1837
    %1880 = vmatprep.subr.mxu0 0.0
    %1881 = vmatpush1.msra.mxu0 %v1836
    %1882 = vmatprep.subr.mxu0 0.0
    %1883 = vmatpush1.msra.mxu0 %v1835
    %1884 = vmatprep.subr.mxu0 0.0
    %1885 = vmatpush1.msra.mxu0 %v1834
    %1886 = vmatprep.subr.mxu0 0.0
    %1887 = vmatpush1.msra.mxu0 %v1833
    %1888 = vmatprep.subr.mxu0 0.0
    %1889 = vmatpush2.msra.mxu0 0.0
    %1890 = vmatprep.subr.mxu0 0.0
    %1891 = vmatpush2.msra.mxu0 0.0
    %1892 = vmatprep.subr.mxu0 0.0
    %1893 = vmatpush2.msra.mxu0 0.0
    %1894 = vmatprep.subr.mxu0 0.0
    %1895 = vmatpush2.msra.mxu0 0.0
    %1896 = vmatprep.subr.mxu0 0.0
    %1897 = vmatpush2.msra.mxu0 0.0
    %1898 = vmatprep.subr.mxu0 0.0
    %1899 = vmatpush2.msra.mxu0 0.0
    %1900 = vmatprep.subr.mxu0 0.0
    %1901 = vmatpush2.msra.mxu0 0.0
    %1902 = vmatprep.subr.mxu0 0.0
    %1903 = vmatpush2.msra.mxu0 0.0
    %1904 = vmatprep.subr.mxu0 0.0
    %1905 = vmatpush2.msra.mxu0 0.0
    %1906 = vmatprep.subr.mxu0 0.0
    %1907 = vmatpush2.msra.mxu0 0.0
    %1908 = vmatprep.subr.mxu0 0.0
    %1909 = vmatpush2.msra.mxu0 0.0
    %1910 = vmatprep.subr.mxu0 0.0
    %1911 = vmatpush2.msra.mxu0 0.0
    %1912 = vmatprep.subr.mxu0 0.0
    %1913 = vmatpush2.msra.mxu0 0.0
    %1914 = vmatprep.subr.mxu0 0.0
    %1915 = vmatpush2.msra.mxu0 0.0
    %1916 = vmatprep.subr.mxu0 0.0
    %1917 = vmatpush2.msra.mxu0 0.0
    %1918 = vmatprep.subr.mxu0 0.0
    %1919 = vmatpush2.msra.mxu0 0.0
    %1920 = vmatprep.mubr.f32.mxu0 0.0
    %1921 = vmatmul.mubr.f32.gmra.mxu0 %v1832
    %v1922 = vpop.f32.mrf.mxu0
    %v1923 = vadd.f32 %v1854, %v1922
    %v1924 = vpop.f32.mrf.mxu0
    %1925 = vdwg.mxu0
    %1926 = vst [vmem:[#allocation11] sm:$0xff] %v1923
    // Predicated region
    $region50: #{tpu_custom_call.1} parent=1 // pred_check
      _
    $region51: #{tpu_custom_call.1} parent=1 // pred_check_branch
      %1928 = sbr.rel (0) target = $region53
    $region52: #{tpu_custom_call.1} parent=1 // pred_region
      %s1930 = ssub.s32 128, 128
      %1931 = vsyncadd [#allocation5], %s1930
      %s1933 = sshll.u32 [#allocation11], 4
      %s1934 = int_to_ptr.vmem [resolvable:$true] %s1933
      %1936 = dma.vmem_to_hbm [thread:$0]  %s1934, 128, %s8, [#allocation5]
    $region53: #{tpu_custom_call.1} parent=1 // pred_fallthru
      _
    // Predicated region
    $region54: #{tpu_custom_call.1} parent=1 // pred_check
      _
    $region55: #{tpu_custom_call.1} parent=1 // pred_check_branch
      %1938 = sbr.rel (0) target = $region57
    $region56: #{tpu_custom_call.1} parent=1 // pred_region
      %1939 = dma.done [#allocation5], 128
    $region57: #{tpu_custom_call.1} parent=1 // pred_fallthru
      _
    %1940 = vsyncpa [#allocation4], 1
    %1941 = vsyncpa [#allocation7], 1
    %1942 = vsyncpa [#allocation10], 1
    %1943 = vsyncpa [#allocation5], 1

</llo_original>
